<compile_context>
chip_gen: v7x
topology: tpu7x:2x2x1
jax: 0.10.0
libtpu: 0.0.40
codegen_flags: <defaults>
</compile_context>

<pallas_src>
import functools
import math

import jax
import jax.numpy as jnp
from jax.experimental import pallas as pl
from jax.experimental.pallas import tpu as pltpu

LN_EPS = 1e-12  # BertConfig default layer_norm_eps
# 48 MiB: leaves headroom on v7x (64 MiB physical per TC); well under the
# 128 MiB physical VMEM of v5e/v6e.
VMEM_LIMIT = 48 * 1024 * 1024


def _pick_tile(dim, pref, align):
    """Largest tile <= pref that divides dim and is a multiple of `align`.
    Falls back to the full dim (always a legal block size)."""
    if dim <= pref:
        return dim
    t = (pref // align) * align
    while t >= align:
        if dim % t == 0:
            return t
        t -= align
    # TODO(synk): for huge odd dims this full-dim fallback can exceed the
    # VMEM budget instead of erroring cleanly.
    return dim


def _pick_k_tile(K, pref):
    """Contraction tile: multiple of 256 when possible (v6e/v7x MXU depth),
    otherwise 128 (lane width / v5e MXU depth)."""
    if K % 256 == 0 and pref >= 256:
        return _pick_tile(K, pref, 256)
    return _pick_tile(K, pref, 128)


# ----------------------------- Pallas kernels ------------------------------

def _mm_kernel(x_ref, w_ref, b_ref, o_ref, acc_ref, *, activation):
    """Tiled matmul with f32 accumulator and optional fused activation."""
    @pl.when(pl.program_id(2) == 0)
    def _():
        acc_ref[...] = jnp.zeros_like(acc_ref)

    acc_ref[...] += jnp.dot(x_ref[...], w_ref[...],
                            preferred_element_type=jnp.float32)

    @pl.when(pl.program_id(2) == pl.num_programs(2) - 1)
    def _():
        h = acc_ref[...] + b_ref[...]
        if activation == "gelu":
            # TODO(synk): HF BERT uses exact erf-based GELU; tanh approx here.
            c = 0.7978845608028654  # sqrt(2/pi)
            h = 0.5 * h * (1.0 + jnp.tanh(c * (h + 0.044715 * h * h * h)))
        elif activation == "tanh":
            h = jnp.tanh(h)
        o_ref[...] = h.astype(o_ref.dtype)


def fused_matmul(x, w, b, *, activation=None, out_dtype=jnp.bfloat16,
                 bm=512, bn=512, bk=512):
    """out = act(x @ w + b), tiled & pipelined (bf16 in, f32 accumulate)."""
    M, K = x.shape
    N = w.shape[1]
    tm = _pick_tile(M, bm, 16)   # bf16 packs (16,128) per vreg
    tn = _pick_tile(N, bn, 128)
    tk = _pick_k_tile(K, bk)
    grid = (M // tm, N // tn, K // tk)
    flops = 2 * M * N * K
    trans = M * N if activation in ("gelu", "tanh") else 0
    bytes_acc = (M * K * x.dtype.itemsize + K * N * w.dtype.itemsize
                 + N * 4 + M * N * jnp.dtype(out_dtype).itemsize)
    return pl.pallas_call(
        functools.partial(_mm_kernel, activation=activation),
        out_shape=jax.ShapeDtypeStruct((M, N), out_dtype),
        grid=grid,
        # NOTE: if bundle dumps show exposed DMA waits on the weight stream,
        # add pipeline_mode=pl.Buffered(3) on the (tk, tn) weight spec.
        in_specs=[pl.BlockSpec((tm, tk), lambda i, j, k: (i, k)),
                  pl.BlockSpec((tk, tn), lambda i, j, k: (k, j)),
                  pl.BlockSpec((1, tn), lambda i, j, k: (0, j))],
        out_specs=pl.BlockSpec((tm, tn), lambda i, j, k: (i, j)),
        scratch_shapes=[pltpu.VMEM((tm, tn), jnp.float32)],
        compiler_params=pltpu.CompilerParams(
            dimension_semantics=("parallel", "parallel", "arbitrary"),
            vmem_limit_bytes=VMEM_LIMIT),
        cost_estimate=pl.CostEstimate(
            flops=flops, transcendentals=trans, bytes_accessed=bytes_acc),
    )(x, w, b.reshape(1, N))


def _mm_res_ln_kernel(x_ref, w_ref, b_ref, r_ref, g_ref, be_ref, o_ref,
                      acc_ref):
    """Tiled matmul with fused bias + residual + LayerNorm epilogue."""
    @pl.when(pl.program_id(1) == 0)
    def _():
        acc_ref[...] = jnp.zeros_like(acc_ref)

    acc_ref[...] += jnp.dot(x_ref[...], w_ref[...],
                            preferred_element_type=jnp.float32)

    @pl.when(pl.program_id(1) == pl.num_programs(1) - 1)
    def _():
        z = acc_ref[...] + b_ref[...] + r_ref[...].astype(jnp.float32)
        mu = jnp.mean(z, axis=-1, keepdims=True)
        var = jnp.mean((z - mu) ** 2, axis=-1, keepdims=True)
        o_ref[...] = ((z - mu) * jax.lax.rsqrt(var + LN_EPS) * g_ref[...]
                      + be_ref[...]).astype(o_ref.dtype)


def matmul_residual_layernorm(x, w, b, res, gamma, beta, *,
                              out_dtype=jnp.bfloat16, bm=512, bk=512):
    """out = LayerNorm(x @ w + b + res).  N (hidden) stays whole per block so
    the LN reduction sees the full row; grid = (M/tm, K/tk)."""
    M, K = x.shape
    N = w.shape[1]
    tm = _pick_tile(M, bm, 16)
    tk = _pick_k_tile(K, bk)
    grid = (M // tm, K // tk)
    flops = 2 * M * N * K + 10 * M * N
    bytes_acc = (M * K * x.dtype.itemsize + K * N * w.dtype.itemsize
                 + M * N * res.dtype.itemsize + 3 * N * 4
                 + M * N * jnp.dtype(out_dtype).itemsize)
    return pl.pallas_call(
        _mm_res_ln_kernel,
        out_shape=jax.ShapeDtypeStruct((M, N), out_dtype),
        grid=grid,
        in_specs=[pl.BlockSpec((tm, tk), lambda i, k: (i, k)),
                  pl.BlockSpec((tk, N), lambda i, k: (k, 0)),
                  pl.BlockSpec((1, N), lambda i, k: (0, 0)),
                  pl.BlockSpec((tm, N), lambda i, k: (i, 0)),
                  pl.BlockSpec((1, N), lambda i, k: (0, 0)),
                  pl.BlockSpec((1, N), lambda i, k: (0, 0))],
        out_specs=pl.BlockSpec((tm, N), lambda i, k: (i, 0)),
        scratch_shapes=[pltpu.VMEM((tm, N), jnp.float32)],
        compiler_params=pltpu.CompilerParams(
            dimension_semantics=("parallel", "arbitrary"),
            vmem_limit_bytes=VMEM_LIMIT),
        cost_estimate=pl.CostEstimate(
            flops=flops, transcendentals=M, bytes_accessed=bytes_acc),
    )(x, w, b.reshape(1, N), res, gamma.reshape(1, N), beta.reshape(1, N))


def _ln_kernel(x_ref, g_ref, b_ref, o_ref):
    z = x_ref[...].astype(jnp.float32)
    mu = jnp.mean(z, axis=-1, keepdims=True)
    var = jnp.mean((z - mu) ** 2, axis=-1, keepdims=True)
    o_ref[...] = ((z - mu) * jax.lax.rsqrt(var + LN_EPS) * g_ref[...]
                  + b_ref[...]).astype(o_ref.dtype)


def layernorm(x, gamma, beta, *, out_dtype=jnp.bfloat16, bm=512):
    M, H = x.shape
    tm = _pick_tile(M, bm, 16)
    return pl.pallas_call(
        _ln_kernel,
        out_shape=jax.ShapeDtypeStruct((M, H), out_dtype),
        grid=(M // tm,),
        in_specs=[pl.BlockSpec((tm, H), lambda i: (i, 0)),
                  pl.BlockSpec((1, H), lambda i: (0, 0)),
                  pl.BlockSpec((1, H), lambda i: (0, 0))],
        out_specs=pl.BlockSpec((tm, H), lambda i: (i, 0)),
        compiler_params=pltpu.CompilerParams(
            dimension_semantics=("parallel",)),
    )(x, gamma.reshape(1, H), beta.reshape(1, H))


def _attn_kernel(qkv_ref, m_ref, o_ref, *, heads, hidden):
    """Self-attention for one batch element.

    qkv_ref : (S, 3H) bf16 block of the fused QKV projection (Q|K|V along
              lanes, head-major inside each projection; score scale already
              folded into wq/bq).
    o_ref   : (S, H) bf16 block of the context slab (lane-dense writeback).

    Heads are processed one at a time (static unroll), so the live score
    working set is a single (S, S) f32 block per head instead of the whole
    (heads, S, S) tensor.
    """
    DH = hidden // heads
    mask = m_ref[0]            # (1, S) f32 additive mask
    # TODO(synk): for S >= 256, tile over KV blocks (flash-style online
    # softmax) instead of materializing a full (S, S) score block per head.
    for h in range(heads):     # static unroll; all slices are static
        q = qkv_ref[:, h * DH:(h + 1) * DH]                            # (S,DH)
        k = qkv_ref[:, hidden + h * DH:hidden + (h + 1) * DH]          # (S,DH)
        v = qkv_ref[:, 2 * hidden + h * DH:2 * hidden + (h + 1) * DH]  # (S,DH)
        s = jax.lax.dot_general(q, k, (((1,), (1,)), ((), ())),
                                preferred_element_type=jnp.float32)    # (S,S)
        s = s + mask
        s = s - jnp.max(s, axis=-1, keepdims=True)
        p = jnp.exp(s)
        denom = jnp.sum(p, axis=-1, keepdims=True)
        p = p * pl.reciprocal(denom, approx=True)
        ctx = jnp.dot(p.astype(v.dtype), v,
                      preferred_element_type=jnp.float32)              # (S,DH)
        o_ref[:, h * DH:(h + 1) * DH] = ctx.astype(o_ref.dtype)


def attention(qkv, mask, *, batch, seq, heads, hidden):
    """qkv: (B*S, 3H) bf16, mask: (B, 1, S) f32 additive -> (B*S, H) bf16."""
    BS = qkv.shape[0]
    DH = hidden // heads
    flops = 4 * batch * heads * seq * seq * DH     # QK^T + PV
    trans = batch * heads * seq * seq              # exp
    bytes_acc = (BS * 3 * hidden * 2 + batch * seq * 4 + BS * hidden * 2)
    # NOTE (v7x megacore): grid=(B,) keeps the output lane-dense; for small
    # odd B one of the two TensorCores may idle — acceptable vs. re-adding
    # 64-lane-minor head layouts.
    return pl.pallas_call(
        functools.partial(_attn_kernel, heads=heads, hidden=hidden),
        out_shape=jax.ShapeDtypeStruct((BS, hidden), jnp.bfloat16),
        grid=(batch,),
        in_specs=[pl.BlockSpec((seq, 3 * hidden), lambda b: (b, 0)),
                  pl.BlockSpec((1, 1, seq), lambda b: (b, 0, 0))],
        out_specs=pl.BlockSpec((seq, hidden), lambda b: (b, 0)),
        compiler_params=pltpu.CompilerParams(
            dimension_semantics=("parallel",),
            vmem_limit_bytes=VMEM_LIMIT),
        cost_estimate=pl.CostEstimate(
            flops=flops, transcendentals=trans, bytes_accessed=bytes_acc),
    )(qkv, mask)


# ------------------------------- parameters --------------------------------

def init_params(key, *, vocab, max_pos, type_vocab, hidden, layers, inter,
                classes):
    keys = iter(jax.random.split(key, 16 + layers * 16))

    def nrm(shape):
        return 0.02 * jax.random.normal(next(keys), shape, jnp.float32)

    p = {
        "word_emb": nrm((vocab, hidden)),
        "pos_emb": nrm((max_pos, hidden)),
        "type_emb": nrm((type_vocab, hidden)),
        "emb_ln_g": jnp.ones((hidden,), jnp.float32),
        "emb_ln_b": jnp.zeros((hidden,), jnp.float32),
        "layers": [],
        "pool_w": nrm((hidden, hidden)),
        "pool_b": jnp.zeros((hidden,), jnp.float32),
        "fc_w": nrm((hidden, classes)),
        "fc_b": jnp.zeros((classes,), jnp.float32),
    }
    for _ in range(layers):
        p["layers"].append({
            "wq": nrm((hidden, hidden)), "bq": jnp.zeros((hidden,), jnp.float32),
            "wk": nrm((hidden, hidden)), "bk": jnp.zeros((hidden,), jnp.float32),
            "wv": nrm((hidden, hidden)), "bv": jnp.zeros((hidden,), jnp.float32),
            "wo": nrm((hidden, hidden)), "bo": jnp.zeros((hidden,), jnp.float32),
            "ln1_g": jnp.ones((hidden,), jnp.float32),
            "ln1_b": jnp.zeros((hidden,), jnp.float32),
            "w1": nrm((hidden, inter)), "b1": jnp.zeros((inter,), jnp.float32),
            "w2": nrm((inter, hidden)), "b2": jnp.zeros((hidden,), jnp.float32),
            "ln2_g": jnp.ones((hidden,), jnp.float32),
            "ln2_b": jnp.zeros((hidden,), jnp.float32),
        })
    return p


def prepare_params(p, heads):
    """One-time (outside hot loop) weight prep: fuse Q/K/V into one (H,3H)
    matmul, fold 1/sqrt(DH) into wq/bq, cast matmul weights to bf16."""
    H = p["word_emb"].shape[1]
    DH = H // heads
    scale = 1.0 / math.sqrt(DH)
    bf = lambda a: a.astype(jnp.bfloat16)

    out = {
        "word_emb": p["word_emb"],
        "pos_emb": p["pos_emb"],
        "type_emb": p["type_emb"],
        "emb_ln_g": p["emb_ln_g"], "emb_ln_b": p["emb_ln_b"],
        "pool_w": bf(p["pool_w"]), "pool_b": p["pool_b"],
        "fc_w": bf(p["fc_w"]), "fc_b": p["fc_b"],
        "layers": [],
    }
    for lyr in p["layers"]:
        wqkv = jnp.concatenate(
            [lyr["wq"] * scale, lyr["wk"], lyr["wv"]], axis=1)
        bqkv = jnp.concatenate([lyr["bq"] * scale, lyr["bk"], lyr["bv"]])
        out["layers"].append({
            "wqkv": bf(wqkv), "bqkv": bqkv,
            "wo": bf(lyr["wo"]), "bo": lyr["bo"],
            "ln1_g": lyr["ln1_g"], "ln1_b": lyr["ln1_b"],
            "w1": bf(lyr["w1"]), "b1": lyr["b1"],
            "w2": bf(lyr["w2"]), "b2": lyr["b2"],
            "ln2_g": lyr["ln2_g"], "ln2_b": lyr["ln2_b"],
        })
    return out


# ------------------------------- forward pass -------------------------------

def bert_forward(p, input_ids, attention_mask, *, heads):
    B, S = input_ids.shape
    H = p["word_emb"].shape[1]

    # Embeddings (token_type_ids=None -> all zeros); gathers are plain-JAX
    # glue.  Cast to bf16 before the LN kernel (stats recomputed in f32
    # inside the kernel) to halve the HBM read of this slab.
    emb = (p["word_emb"][input_ids]
           + p["pos_emb"][:S][None, :, :]
           + p["type_emb"][0][None, None, :])
    x = layernorm(emb.reshape(B * S, H).astype(jnp.bfloat16),
                  p["emb_ln_g"], p["emb_ln_b"])                 # (B*S, H) bf16

    # Extended additive attention mask, (B, 1, S).
    mask3 = ((1.0 - attention_mask.astype(jnp.float32)) * -10000.0)[:, None, :]

    for lyr in p["layers"]:
        # Fused Q/K/V projection (scale already folded into wq/bq); the raw
        # (B*S, 3H) slab feeds attention directly — no head split/merge
        # transposes in XLA.
        qkv = fused_matmul(x, lyr["wqkv"], lyr["bqkv"])         # (B*S, 3H)
        ctx = attention(qkv, mask3, batch=B, seq=S,
                        heads=heads, hidden=H)                  # (B*S, H)

        # Output projection with fused bias + residual + LayerNorm.
        x = matmul_residual_layernorm(ctx, lyr["wo"], lyr["bo"], x,
                                      lyr["ln1_g"], lyr["ln1_b"])
        # FFN: GELU fused into matmul 1, bias+residual+LN fused into matmul 2.
        h = fused_matmul(x, lyr["w1"], lyr["b1"], activation="gelu", bk=1024)
        x = matmul_residual_layernorm(h, lyr["w2"], lyr["b2"], x,
                                      lyr["ln2_g"], lyr["ln2_b"], bk=1024)

    # Pooler: tanh(W * h_cls + b) on the [CLS] (first) token.
    cls = x.reshape(B, S, H)[:, 0, :]
    pooled = fused_matmul(cls, p["pool_w"], p["pool_b"], activation="tanh")

    # Classification head (self.fc).
    logits = fused_matmul(pooled, p["fc_w"], p["fc_b"], out_dtype=jnp.float32)
    return logits


# ----------------------------------- main -----------------------------------

if __name__ == "__main__":
    # Small, BERT-shaped config (bert-large scaled down): hidden=32, heads=4,
    # layers=2, intermediate=64, seq=8, batch=2, classes=5.
    B, S = 2, 8
    HIDDEN, HEADS, LAYERS, INTER = 32, 4, 2, 64
    VOCAB, MAX_POS, TYPE_VOCAB, CLASSES = 100, 16, 2, 5

    root = jax.random.PRNGKey(0)
    k_params, k_ids = jax.random.split(root)

    raw_params = init_params(k_params, vocab=VOCAB, max_pos=MAX_POS,
                             type_vocab=TYPE_VOCAB, hidden=HIDDEN,
                             layers=LAYERS, inter=INTER, classes=CLASSES)
    params = prepare_params(raw_params, HEADS)

    input_ids = jax.random.randint(k_ids, (B, S), 0, VOCAB, dtype=jnp.int32)
    attention_mask = jnp.ones((B, S), dtype=jnp.int32)

    fwd = jax.jit(functools.partial(bert_forward, heads=HEADS))
    logits = fwd(params, input_ids, attention_mask)
    logits = jax.block_until_ready(logits)
    assert logits.shape == (B, CLASSES) and logits.dtype == jnp.float32
    print("KERNEL_OK")
</pallas_src>

<mosaic_0001>
module attributes {stable_mosaic.version = 11 : i64} {
  func.func @_mm_kernel(%arg0: i32, %arg1: i32, %arg2: i32, %arg3: memref<16x32xbf16, #tpu.memory_space<vmem>>, %arg4: memref<32x96xbf16, #tpu.memory_space<vmem>>, %arg5: memref<1x96xf32, #tpu.memory_space<vmem>>, %arg6: memref<16x96xbf16, #tpu.memory_space<vmem>>, %arg7: memref<16x96xf32, #tpu.memory_space<vmem>>) attributes {dimension_semantics = [#tpu.dimension_semantics<parallel>, #tpu.dimension_semantics<parallel>, #tpu.dimension_semantics<arbitrary>], iteration_bounds = array<i64: 1, 1, 1>, scalar_prefetch = 0 : i64, scratch_operands = 1 : i64, tpu.core_type = #tpu.core_type<tc>, window_params = [{transform_indices = @transform_0, window_bounds = array<i64: 16, 32>}, {transform_indices = @transform_1, window_bounds = array<i64: 32, 96>}, {transform_indices = @transform_2, window_bounds = array<i64: 1, 96>}, {transform_indices = @transform_3, window_bounds = array<i64: 16, 96>}]} {
    %c0_i32 = arith.constant 0 : i32
    %0 = arith.cmpi eq, %arg2, %c0_i32 : i32
    %1 = arith.extui %0 : i1 to i32
    %c0_i32_0 = arith.constant 0 : i32
    %2 = arith.cmpi ne, %1, %c0_i32_0 : i32
    scf.if %2 {
      %cst_10 = arith.constant 0.000000e+00 : f32
      %12 = vector.broadcast %cst_10 : f32 to vector<16x96xf32>
      %c0_11 = arith.constant 0 : index
      %c0_12 = arith.constant 0 : index
      %13 = vector.load %arg7[%c0_11, %c0_12] : memref<16x96xf32, #tpu.memory_space<vmem>>, vector<16x96xf32>
      tpu.vector_store %arg7[%c0_11, %c0_12], %12 {strides = array<i32>} : memref<16x96xf32, #tpu.memory_space<vmem>>, vector<16x96xf32>,
    } else {
    }
    %c0 = arith.constant 0 : index
    %c0_1 = arith.constant 0 : index
    %3 = vector.load %arg7[%c0, %c0_1] : memref<16x96xf32, #tpu.memory_space<vmem>>, vector<16x96xf32>
    %c0_2 = arith.constant 0 : index
    %c0_3 = arith.constant 0 : index
    %4 = vector.load %arg3[%c0_2, %c0_3] : memref<16x32xbf16, #tpu.memory_space<vmem>>, vector<16x32xbf16>
    %c0_4 = arith.constant 0 : index
    %c0_5 = arith.constant 0 : index
    %5 = vector.load %arg4[%c0_4, %c0_5] : memref<32x96xbf16, #tpu.memory_space<vmem>>, vector<32x96xbf16>
    %cst = arith.constant dense<0.000000e+00> : vector<16x96xf32>
    %6 = tpu.matmul %4, %5, %cst {dimension_numbers = #tpu.dot_dimension_numbers<[1], [0], [0], [1], [0, 0, 1, 1], [], []>} : vector<16x32xbf16>, vector<32x96xbf16>, vector<16x96xf32> -> vector<16x96xf32>
    %7 = arith.addf %3, %6 : vector<16x96xf32>
    %c0_6 = arith.constant 0 : index
    %c0_7 = arith.constant 0 : index
    %8 = vector.load %arg7[%c0_6, %c0_7] : memref<16x96xf32, #tpu.memory_space<vmem>>, vector<16x96xf32>
    tpu.vector_store %arg7[%c0_6, %c0_7], %7 {strides = array<i32>} : memref<16x96xf32, #tpu.memory_space<vmem>>, vector<16x96xf32>,
    %c0_i32_8 = arith.constant 0 : i32
    %9 = arith.cmpi eq, %arg2, %c0_i32_8 : i32
    %10 = arith.extui %9 : i1 to i32
    %c0_i32_9 = arith.constant 0 : i32
    %11 = arith.cmpi ne, %10, %c0_i32_9 : i32
    scf.if %11 {
      %c0_10 = arith.constant 0 : index
      %c0_11 = arith.constant 0 : index
      %12 = vector.load %arg7[%c0_10, %c0_11] : memref<16x96xf32, #tpu.memory_space<vmem>>, vector<16x96xf32>
      %c0_12 = arith.constant 0 : index
      %c0_13 = arith.constant 0 : index
      %13 = vector.load %arg5[%c0_12, %c0_13] : memref<1x96xf32, #tpu.memory_space<vmem>>, vector<1x96xf32>
      %14 = vector.broadcast %13 : vector<1x96xf32> to vector<16x96xf32>
      %15 = arith.addf %12, %14 : vector<16x96xf32>
      %16 = arith.truncf %15 : vector<16x96xf32> to vector<16x96xbf16>
      %c0_14 = arith.constant 0 : index
      %c0_15 = arith.constant 0 : index
      %17 = vector.load %arg6[%c0_14, %c0_15] : memref<16x96xbf16, #tpu.memory_space<vmem>>, vector<16x96xbf16>
      tpu.vector_store %arg6[%c0_14, %c0_15], %16 {strides = array<i32>} : memref<16x96xbf16, #tpu.memory_space<vmem>>, vector<16x96xbf16>,
    } else {
    }
    return
  }
  func.func @transform_0(%arg0: i32, %arg1: i32, %arg2: i32) -> (i32, i32) {
    %c0_i32 = arith.constant 0 : i32
    return %arg0, %arg2 : i32, i32
  }
  func.func @transform_1(%arg0: i32, %arg1: i32, %arg2: i32) -> (i32, i32) {
    %c0_i32 = arith.constant 0 : i32
    return %arg2, %arg1 : i32, i32
  }
  func.func @transform_2(%arg0: i32, %arg1: i32, %arg2: i32) -> (i32, i32) {
    %c0_i32 = arith.constant 0 : i32
    %c0_i32_0 = arith.constant 0 : i32
    return %c0_i32, %arg1 : i32, i32
  }
  func.func @transform_3(%arg0: i32, %arg1: i32, %arg2: i32) -> (i32, i32) {
    %c0_i32 = arith.constant 0 : i32
    return %arg0, %arg1 : i32, i32
  }
}

module attributes {stable_mosaic.version = 11 : i64} {
  func.func @_ln_kernel(%arg0: i32, %arg1: memref<16x32xbf16, #tpu.memory_space<vmem>>, %arg2: memref<1x32xf32, #tpu.memory_space<vmem>>, %arg3: memref<1x32xf32, #tpu.memory_space<vmem>>, %arg4: memref<16x32xbf16, #tpu.memory_space<vmem>>) attributes {dimension_semantics = [#tpu.dimension_semantics<parallel>], iteration_bounds = array<i64: 1>, scalar_prefetch = 0 : i64, scratch_operands = 0 : i64, tpu.core_type = #tpu.core_type<tc>, window_params = [{transform_indices = @transform_0, window_bounds = array<i64: 16, 32>}, {pipeline_mode = #tpu.pipeline_mode<synchronous>, transform_indices = @transform_1, window_bounds = array<i64: 1, 32>}, {pipeline_mode = #tpu.pipeline_mode<synchronous>, transform_indices = @transform_2, window_bounds = array<i64: 1, 32>}, {transform_indices = @transform_3, window_bounds = array<i64: 16, 32>}]} {
    %c0 = arith.constant 0 : index
    %c0_0 = arith.constant 0 : index
    %0 = vector.load %arg1[%c0, %c0_0] : memref<16x32xbf16, #tpu.memory_space<vmem>>, vector<16x32xbf16>
    %1 = arith.extf %0 : vector<16x32xbf16> to vector<16x32xf32>
    %cst = arith.constant dense<0.000000e+00> : vector<16xf32>
    %2 = vector.multi_reduction <add>, %1, %cst [1] : vector<16x32xf32> to vector<16xf32>
    %3 = vector.shape_cast %2 : vector<16xf32> to vector<16x1xf32>
    %cst_1 = arith.constant 3.200000e+01 : f32
    %4 = vector.broadcast %cst_1 : f32 to vector<16x1xf32>
    %5 = arith.divf %3, %4 : vector<16x1xf32>
    %6 = vector.broadcast %5 : vector<16x1xf32> to vector<16x32xf32>
    %7 = arith.subf %1, %6 : vector<16x32xf32>
    %8 = arith.mulf %7, %7 : vector<16x32xf32>
    %cst_2 = arith.constant dense<0.000000e+00> : vector<16xf32>
    %9 = vector.multi_reduction <add>, %8, %cst_2 [1] : vector<16x32xf32> to vector<16xf32>
    %10 = vector.shape_cast %9 : vector<16xf32> to vector<16x1xf32>
    %cst_3 = arith.constant 3.200000e+01 : f32
    %11 = vector.broadcast %cst_3 : f32 to vector<16x1xf32>
    %12 = arith.divf %10, %11 : vector<16x1xf32>
    %13 = vector.broadcast %5 : vector<16x1xf32> to vector<16x32xf32>
    %14 = arith.subf %1, %13 : vector<16x32xf32>
    %cst_4 = arith.constant 9.99999996E-13 : f32
    %15 = vector.broadcast %cst_4 : f32 to vector<16x1xf32>
    %16 = arith.addf %12, %15 : vector<16x1xf32>
    %17 = math.rsqrt %16 : vector<16x1xf32>
    %18 = vector.broadcast %17 : vector<16x1xf32> to vector<16x32xf32>
    %19 = arith.mulf %14, %18 : vector<16x32xf32>
    %c0_5 = arith.constant 0 : index
    %c0_6 = arith.constant 0 : index
    %20 = vector.load %arg2[%c0_5, %c0_6] : memref<1x32xf32, #tpu.memory_space<vmem>>, vector<1x32xf32>
    %21 = vector.broadcast %20 : vector<1x32xf32> to vector<16x32xf32>
    %22 = arith.mulf %19, %21 : vector<16x32xf32>
    %c0_7 = arith.constant 0 : index
    %c0_8 = arith.constant 0 : index
    %23 = vector.load %arg3[%c0_7, %c0_8] : memref<1x32xf32, #tpu.memory_space<vmem>>, vector<1x32xf32>
    %24 = vector.broadcast %23 : vector<1x32xf32> to vector<16x32xf32>
    %25 = arith.addf %22, %24 : vector<16x32xf32>
    %26 = arith.truncf %25 : vector<16x32xf32> to vector<16x32xbf16>
    %c0_9 = arith.constant 0 : index
    %c0_10 = arith.constant 0 : index
    %27 = vector.load %arg4[%c0_9, %c0_10] : memref<16x32xbf16, #tpu.memory_space<vmem>>, vector<16x32xbf16>
    tpu.vector_store %arg4[%c0_9, %c0_10], %26 {strides = array<i32>} : memref<16x32xbf16, #tpu.memory_space<vmem>>, vector<16x32xbf16>,
    return
  }
  func.func @transform_0(%arg0: i32) -> (i32, i32) {
    %c0_i32 = arith.constant 0 : i32
    %c0_i32_0 = arith.constant 0 : i32
    return %arg0, %c0_i32 : i32, i32
  }
  func.func @transform_1(%arg0: i32) -> (i32, i32) {
    %c0_i32 = arith.constant 0 : i32
    %c0_i32_0 = arith.constant 0 : i32
    %c0_i32_1 = arith.constant 0 : i32
    return %c0_i32, %c0_i32_0 : i32, i32
  }
  func.func @transform_2(%arg0: i32) -> (i32, i32) {
    %c0_i32 = arith.constant 0 : i32
    %c0_i32_0 = arith.constant 0 : i32
    %c0_i32_1 = arith.constant 0 : i32
    return %c0_i32, %c0_i32_0 : i32, i32
  }
  func.func @transform_3(%arg0: i32) -> (i32, i32) {
    %c0_i32 = arith.constant 0 : i32
    %c0_i32_0 = arith.constant 0 : i32
    return %arg0, %c0_i32 : i32, i32
  }
}

module attributes {stable_mosaic.version = 11 : i64} {
  func.func @_attn_kernel(%arg0: i32, %arg1: memref<8x96xbf16, #tpu.memory_space<vmem>>, %arg2: memref<1x1x8xf32, #tpu.memory_space<vmem>>, %arg3: memref<8x32xbf16, #tpu.memory_space<vmem>>) attributes {dimension_semantics = [#tpu.dimension_semantics<parallel>], iteration_bounds = array<i64: 2>, scalar_prefetch = 0 : i64, scratch_operands = 0 : i64, tpu.core_type = #tpu.core_type<tc>, window_params = [{transform_indices = @transform_0, window_bounds = array<i64: 8, 96>}, {transform_indices = @transform_1, window_bounds = array<i64: 1, 1, 8>}, {transform_indices = @transform_2, window_bounds = array<i64: 8, 32>}]} {
    %c0 = arith.constant 0 : index
    %c0_0 = arith.constant 0 : index
    %c0_1 = arith.constant 0 : index
    %0 = vector.load %arg2[%c0, %c0_0, %c0_1] : memref<1x1x8xf32, #tpu.memory_space<vmem>>, vector<1x1x8xf32>
    %1 = vector.shape_cast %0 : vector<1x1x8xf32> to vector<1x8xf32>
    %c0_2 = arith.constant 0 : index
    %c0_3 = arith.constant 0 : index
    %2 = vector.load %arg1[%c0_2, %c0_3] : memref<8x96xbf16, #tpu.memory_space<vmem>>, vector<8x8xbf16>
    %c0_4 = arith.constant 0 : index
    %c32 = arith.constant 32 : index
    %3 = vector.load %arg1[%c0_4, %c32] : memref<8x96xbf16, #tpu.memory_space<vmem>>, vector<8x8xbf16>
    %c0_5 = arith.constant 0 : index
    %c64 = arith.constant 64 : index
    %4 = vector.load %arg1[%c0_5, %c64] : memref<8x96xbf16, #tpu.memory_space<vmem>>, vector<8x8xbf16>
    %cst = arith.constant dense<0.000000e+00> : vector<8x8xf32>
    %5 = tpu.matmul %2, %3, %cst {dimension_numbers = #tpu.dot_dimension_numbers<[1], [1], [0], [0], [0, 0, 1, 0], [], []>} : vector<8x8xbf16>, vector<8x8xbf16>, vector<8x8xf32> -> vector<8x8xf32>
    %6 = vector.broadcast %1 : vector<1x8xf32> to vector<8x8xf32>
    %7 = arith.addf %5, %6 : vector<8x8xf32>
    %cst_6 = arith.constant dense<0xFF800000> : vector<8xf32>
    %8 = vector.multi_reduction <maximumf>, %7, %cst_6 [1] : vector<8x8xf32> to vector<8xf32>
    %9 = vector.shape_cast %8 : vector<8xf32> to vector<8x1xf32>
    %10 = vector.broadcast %9 : vector<8x1xf32> to vector<8x8xf32>
    %11 = arith.subf %7, %10 : vector<8x8xf32>
    %12 = math.exp %11 : vector<8x8xf32>
    %cst_7 = arith.constant dense<0.000000e+00> : vector<8xf32>
    %13 = vector.multi_reduction <add>, %12, %cst_7 [1] : vector<8x8xf32> to vector<8xf32>
    %14 = vector.shape_cast %13 : vector<8xf32> to vector<8x1xf32>
    %15 = tpu.reciprocal %14 {approx = true} : vector<8x1xf32> -> vector<8x1xf32>
    %16 = vector.broadcast %15 : vector<8x1xf32> to vector<8x8xf32>
    %17 = arith.mulf %12, %16 : vector<8x8xf32>
    %18 = arith.truncf %17 : vector<8x8xf32> to vector<8x8xbf16>
    %cst_8 = arith.constant dense<0.000000e+00> : vector<8x8xf32>
    %19 = tpu.matmul %18, %4, %cst_8 {dimension_numbers = #tpu.dot_dimension_numbers<[1], [0], [0], [1], [0, 0, 1, 1], [], []>} : vector<8x8xbf16>, vector<8x8xbf16>, vector<8x8xf32> -> vector<8x8xf32>
    %20 = arith.truncf %19 : vector<8x8xf32> to vector<8x8xbf16>
    %c0_9 = arith.constant 0 : index
    %c0_10 = arith.constant 0 : index
    %21 = vector.load %arg3[%c0_9, %c0_10] : memref<8x32xbf16, #tpu.memory_space<vmem>>, vector<8x8xbf16>
    tpu.vector_store %arg3[%c0_9, %c0_10], %20 {strides = array<i32>} : memref<8x32xbf16, #tpu.memory_space<vmem>>, vector<8x8xbf16>,
    %c0_11 = arith.constant 0 : index
    %c8 = arith.constant 8 : index
    %22 = vector.load %arg1[%c0_11, %c8] : memref<8x96xbf16, #tpu.memory_space<vmem>>, vector<8x8xbf16>
    %c0_12 = arith.constant 0 : index
    %c40 = arith.constant 40 : index
    %23 = vector.load %arg1[%c0_12, %c40] : memref<8x96xbf16, #tpu.memory_space<vmem>>, vector<8x8xbf16>
    %c0_13 = arith.constant 0 : index
    %c72 = arith.constant 72 : index
    %24 = vector.load %arg1[%c0_13, %c72] : memref<8x96xbf16, #tpu.memory_space<vmem>>, vector<8x8xbf16>
    %cst_14 = arith.constant dense<0.000000e+00> : vector<8x8xf32>
    %25 = tpu.matmul %22, %23, %cst_14 {dimension_numbers = #tpu.dot_dimension_numbers<[1], [1], [0], [0], [0, 0, 1, 0], [], []>} : vector<8x8xbf16>, vector<8x8xbf16>, vector<8x8xf32> -> vector<8x8xf32>
    %26 = vector.broadcast %1 : vector<1x8xf32> to vector<8x8xf32>
    %27 = arith.addf %25, %26 : vector<8x8xf32>
    %cst_15 = arith.constant dense<0xFF800000> : vector<8xf32>
    %28 = vector.multi_reduction <maximumf>, %27, %cst_15 [1] : vector<8x8xf32> to vector<8xf32>
    %29 = vector.shape_cast %28 : vector<8xf32> to vector<8x1xf32>
    %30 = vector.broadcast %29 : vector<8x1xf32> to vector<8x8xf32>
    %31 = arith.subf %27, %30 : vector<8x8xf32>
    %32 = math.exp %31 : vector<8x8xf32>
    %cst_16 = arith.constant dense<0.000000e+00> : vector<8xf32>
    %33 = vector.multi_reduction <add>, %32, %cst_16 [1] : vector<8x8xf32> to vector<8xf32>
    %34 = vector.shape_cast %33 : vector<8xf32> to vector<8x1xf32>
    %35 = tpu.reciprocal %34 {approx = true} : vector<8x1xf32> -> vector<8x1xf32>
    %36 = vector.broadcast %35 : vector<8x1xf32> to vector<8x8xf32>
    %37 = arith.mulf %32, %36 : vector<8x8xf32>
    %38 = arith.truncf %37 : vector<8x8xf32> to vector<8x8xbf16>
    %cst_17 = arith.constant dense<0.000000e+00> : vector<8x8xf32>
    %39 = tpu.matmul %38, %24, %cst_17 {dimension_numbers = #tpu.dot_dimension_numbers<[1], [0], [0], [1], [0, 0, 1, 1], [], []>} : vector<8x8xbf16>, vector<8x8xbf16>, vector<8x8xf32> -> vector<8x8xf32>
    %40 = arith.truncf %39 : vector<8x8xf32> to vector<8x8xbf16>
    %c0_18 = arith.constant 0 : index
    %c8_19 = arith.constant 8 : index
    %41 = vector.load %arg3[%c0_18, %c8_19] : memref<8x32xbf16, #tpu.memory_space<vmem>>, vector<8x8xbf16>
    tpu.vector_store %arg3[%c0_18, %c8_19], %40 {strides = array<i32>} : memref<8x32xbf16, #tpu.memory_space<vmem>>, vector<8x8xbf16>,
    %c0_20 = arith.constant 0 : index
    %c16 = arith.constant 16 : index
    %42 = vector.load %arg1[%c0_20, %c16] : memref<8x96xbf16, #tpu.memory_space<vmem>>, vector<8x8xbf16>
    %c0_21 = arith.constant 0 : index
    %c48 = arith.constant 48 : index
    %43 = vector.load %arg1[%c0_21, %c48] : memref<8x96xbf16, #tpu.memory_space<vmem>>, vector<8x8xbf16>
    %c0_22 = arith.constant 0 : index
    %c80 = arith.constant 80 : index
    %44 = vector.load %arg1[%c0_22, %c80] : memref<8x96xbf16, #tpu.memory_space<vmem>>, vector<8x8xbf16>
    %cst_23 = arith.constant dense<0.000000e+00> : vector<8x8xf32>
    %45 = tpu.matmul %42, %43, %cst_23 {dimension_numbers = #tpu.dot_dimension_numbers<[1], [1], [0], [0], [0, 0, 1, 0], [], []>} : vector<8x8xbf16>, vector<8x8xbf16>, vector<8x8xf32> -> vector<8x8xf32>
    %46 = vector.broadcast %1 : vector<1x8xf32> to vector<8x8xf32>
    %47 = arith.addf %45, %46 : vector<8x8xf32>
    %cst_24 = arith.constant dense<0xFF800000> : vector<8xf32>
    %48 = vector.multi_reduction <maximumf>, %47, %cst_24 [1] : vector<8x8xf32> to vector<8xf32>
    %49 = vector.shape_cast %48 : vector<8xf32> to vector<8x1xf32>
    %50 = vector.broadcast %49 : vector<8x1xf32> to vector<8x8xf32>
    %51 = arith.subf %47, %50 : vector<8x8xf32>
    %52 = math.exp %51 : vector<8x8xf32>
    %cst_25 = arith.constant dense<0.000000e+00> : vector<8xf32>
    %53 = vector.multi_reduction <add>, %52, %cst_25 [1] : vector<8x8xf32> to vector<8xf32>
    %54 = vector.shape_cast %53 : vector<8xf32> to vector<8x1xf32>
    %55 = tpu.reciprocal %54 {approx = true} : vector<8x1xf32> -> vector<8x1xf32>
    %56 = vector.broadcast %55 : vector<8x1xf32> to vector<8x8xf32>
    %57 = arith.mulf %52, %56 : vector<8x8xf32>
    %58 = arith.truncf %57 : vector<8x8xf32> to vector<8x8xbf16>
    %cst_26 = arith.constant dense<0.000000e+00> : vector<8x8xf32>
    %59 = tpu.matmul %58, %44, %cst_26 {dimension_numbers = #tpu.dot_dimension_numbers<[1], [0], [0], [1], [0, 0, 1, 1], [], []>} : vector<8x8xbf16>, vector<8x8xbf16>, vector<8x8xf32> -> vector<8x8xf32>
    %60 = arith.truncf %59 : vector<8x8xf32> to vector<8x8xbf16>
    %c0_27 = arith.constant 0 : index
    %c16_28 = arith.constant 16 : index
    %61 = vector.load %arg3[%c0_27, %c16_28] : memref<8x32xbf16, #tpu.memory_space<vmem>>, vector<8x8xbf16>
    tpu.vector_store %arg3[%c0_27, %c16_28], %60 {strides = array<i32>} : memref<8x32xbf16, #tpu.memory_space<vmem>>, vector<8x8xbf16>,
    %c0_29 = arith.constant 0 : index
    %c24 = arith.constant 24 : index
    %62 = vector.load %arg1[%c0_29, %c24] : memref<8x96xbf16, #tpu.memory_space<vmem>>, vector<8x8xbf16>
    %c0_30 = arith.constant 0 : index
    %c56 = arith.constant 56 : index
    %63 = vector.load %arg1[%c0_30, %c56] : memref<8x96xbf16, #tpu.memory_space<vmem>>, vector<8x8xbf16>
    %c0_31 = arith.constant 0 : index
    %c88 = arith.constant 88 : index
    %64 = vector.load %arg1[%c0_31, %c88] : memref<8x96xbf16, #tpu.memory_space<vmem>>, vector<8x8xbf16>
    %cst_32 = arith.constant dense<0.000000e+00> : vector<8x8xf32>
    %65 = tpu.matmul %62, %63, %cst_32 {dimension_numbers = #tpu.dot_dimension_numbers<[1], [1], [0], [0], [0, 0, 1, 0], [], []>} : vector<8x8xbf16>, vector<8x8xbf16>, vector<8x8xf32> -> vector<8x8xf32>
    %66 = vector.broadcast %1 : vector<1x8xf32> to vector<8x8xf32>
    %67 = arith.addf %65, %66 : vector<8x8xf32>
    %cst_33 = arith.constant dense<0xFF800000> : vector<8xf32>
    %68 = vector.multi_reduction <maximumf>, %67, %cst_33 [1] : vector<8x8xf32> to vector<8xf32>
    %69 = vector.shape_cast %68 : vector<8xf32> to vector<8x1xf32>
    %70 = vector.broadcast %69 : vector<8x1xf32> to vector<8x8xf32>
    %71 = arith.subf %67, %70 : vector<8x8xf32>
    %72 = math.exp %71 : vector<8x8xf32>
    %cst_34 = arith.constant dense<0.000000e+00> : vector<8xf32>
    %73 = vector.multi_reduction <add>, %72, %cst_34 [1] : vector<8x8xf32> to vector<8xf32>
    %74 = vector.shape_cast %73 : vector<8xf32> to vector<8x1xf32>
    %75 = tpu.reciprocal %74 {approx = true} : vector<8x1xf32> -> vector<8x1xf32>
    %76 = vector.broadcast %75 : vector<8x1xf32> to vector<8x8xf32>
    %77 = arith.mulf %72, %76 : vector<8x8xf32>
    %78 = arith.truncf %77 : vector<8x8xf32> to vector<8x8xbf16>
    %cst_35 = arith.constant dense<0.000000e+00> : vector<8x8xf32>
    %79 = tpu.matmul %78, %64, %cst_35 {dimension_numbers = #tpu.dot_dimension_numbers<[1], [0], [0], [1], [0, 0, 1, 1], [], []>} : vector<8x8xbf16>, vector<8x8xbf16>, vector<8x8xf32> -> vector<8x8xf32>
    %80 = arith.truncf %79 : vector<8x8xf32> to vector<8x8xbf16>
    %c0_36 = arith.constant 0 : index
    %c24_37 = arith.constant 24 : index
    %81 = vector.load %arg3[%c0_36, %c24_37] : memref<8x32xbf16, #tpu.memory_space<vmem>>, vector<8x8xbf16>
    tpu.vector_store %arg3[%c0_36, %c24_37], %80 {strides = array<i32>} : memref<8x32xbf16, #tpu.memory_space<vmem>>, vector<8x8xbf16>,
    return
  }
  func.func @transform_0(%arg0: i32) -> (i32, i32) {
    %c0_i32 = arith.constant 0 : i32
    %c0_i32_0 = arith.constant 0 : i32
    return %arg0, %c0_i32 : i32, i32
  }
  func.func @transform_1(%arg0: i32) -> (i32, i32, i32) {
    %c0_i32 = arith.constant 0 : i32
    %c0_i32_0 = arith.constant 0 : i32
    %c0_i32_1 = arith.constant 0 : i32
    return %arg0, %c0_i32, %c0_i32_0 : i32, i32, i32
  }
  func.func @transform_2(%arg0: i32) -> (i32, i32) {
    %c0_i32 = arith.constant 0 : i32
    %c0_i32_0 = arith.constant 0 : i32
    return %arg0, %c0_i32 : i32, i32
  }
}

module attributes {stable_mosaic.version = 11 : i64} {
  func.func @_mm_res_ln_kernel(%arg0: i32, %arg1: i32, %arg2: memref<16x32xbf16, #tpu.memory_space<vmem>>, %arg3: memref<32x32xbf16, #tpu.memory_space<vmem>>, %arg4: memref<1x32xf32, #tpu.memory_space<vmem>>, %arg5: memref<16x32xbf16, #tpu.memory_space<vmem>>, %arg6: memref<1x32xf32, #tpu.memory_space<vmem>>, %arg7: memref<1x32xf32, #tpu.memory_space<vmem>>, %arg8: memref<16x32xbf16, #tpu.memory_space<vmem>>, %arg9: memref<16x32xf32, #tpu.memory_space<vmem>>) attributes {dimension_semantics = [#tpu.dimension_semantics<parallel>, #tpu.dimension_semantics<arbitrary>], iteration_bounds = array<i64: 1, 1>, scalar_prefetch = 0 : i64, scratch_operands = 1 : i64, tpu.core_type = #tpu.core_type<tc>, window_params = [{transform_indices = @transform_0, window_bounds = array<i64: 16, 32>}, {transform_indices = @transform_1, window_bounds = array<i64: 32, 32>}, {pipeline_mode = #tpu.pipeline_mode<synchronous>, transform_indices = @transform_2, window_bounds = array<i64: 1, 32>}, {transform_indices = @transform_3, window_bounds = array<i64: 16, 32>}, {pipeline_mode = #tpu.pipeline_mode<synchronous>, transform_indices = @transform_4, window_bounds = array<i64: 1, 32>}, {pipeline_mode = #tpu.pipeline_mode<synchronous>, transform_indices = @transform_5, window_bounds = array<i64: 1, 32>}, {transform_indices = @transform_6, window_bounds = array<i64: 16, 32>}]} {
    %c0_i32 = arith.constant 0 : i32
    %0 = arith.cmpi eq, %arg1, %c0_i32 : i32
    %1 = arith.extui %0 : i1 to i32
    %c0_i32_0 = arith.constant 0 : i32
    %2 = arith.cmpi ne, %1, %c0_i32_0 : i32
    scf.if %2 {
      %cst_10 = arith.constant 0.000000e+00 : f32
      %12 = vector.broadcast %cst_10 : f32 to vector<16x32xf32>
      %c0_11 = arith.constant 0 : index
      %c0_12 = arith.constant 0 : index
      %13 = vector.load %arg9[%c0_11, %c0_12] : memref<16x32xf32, #tpu.memory_space<vmem>>, vector<16x32xf32>
      tpu.vector_store %arg9[%c0_11, %c0_12], %12 {strides = array<i32>} : memref<16x32xf32, #tpu.memory_space<vmem>>, vector<16x32xf32>,
    } else {
    }
    %c0 = arith.constant 0 : index
    %c0_1 = arith.constant 0 : index
    %3 = vector.load %arg9[%c0, %c0_1] : memref<16x32xf32, #tpu.memory_space<vmem>>, vector<16x32xf32>
    %c0_2 = arith.constant 0 : index
    %c0_3 = arith.constant 0 : index
    %4 = vector.load %arg2[%c0_2, %c0_3] : memref<16x32xbf16, #tpu.memory_space<vmem>>, vector<16x32xbf16>
    %c0_4 = arith.constant 0 : index
    %c0_5 = arith.constant 0 : index
    %5 = vector.load %arg3[%c0_4, %c0_5] : memref<32x32xbf16, #tpu.memory_space<vmem>>, vector<32x32xbf16>
    %cst = arith.constant dense<0.000000e+00> : vector<16x32xf32>
    %6 = tpu.matmul %4, %5, %cst {dimension_numbers = #tpu.dot_dimension_numbers<[1], [0], [0], [1], [0, 0, 1, 1], [], []>} : vector<16x32xbf16>, vector<32x32xbf16>, vector<16x32xf32> -> vector<16x32xf32>
    %7 = arith.addf %3, %6 : vector<16x32xf32>
    %c0_6 = arith.constant 0 : index
    %c0_7 = arith.constant 0 : index
    %8 = vector.load %arg9[%c0_6, %c0_7] : memref<16x32xf32, #tpu.memory_space<vmem>>, vector<16x32xf32>
    tpu.vector_store %arg9[%c0_6, %c0_7], %7 {strides = array<i32>} : memref<16x32xf32, #tpu.memory_space<vmem>>, vector<16x32xf32>,
    %c0_i32_8 = arith.constant 0 : i32
    %9 = arith.cmpi eq, %arg1, %c0_i32_8 : i32
    %10 = arith.extui %9 : i1 to i32
    %c0_i32_9 = arith.constant 0 : i32
    %11 = arith.cmpi ne, %10, %c0_i32_9 : i32
    scf.if %11 {
      %c0_10 = arith.constant 0 : index
      %c0_11 = arith.constant 0 : index
      %12 = vector.load %arg9[%c0_10, %c0_11] : memref<16x32xf32, #tpu.memory_space<vmem>>, vector<16x32xf32>
      %c0_12 = arith.constant 0 : index
      %c0_13 = arith.constant 0 : index
      %13 = vector.load %arg4[%c0_12, %c0_13] : memref<1x32xf32, #tpu.memory_space<vmem>>, vector<1x32xf32>
      %14 = vector.broadcast %13 : vector<1x32xf32> to vector<16x32xf32>
      %15 = arith.addf %12, %14 : vector<16x32xf32>
      %c0_14 = arith.constant 0 : index
      %c0_15 = arith.constant 0 : index
      %16 = vector.load %arg5[%c0_14, %c0_15] : memref<16x32xbf16, #tpu.memory_space<vmem>>, vector<16x32xbf16>
      %17 = arith.extf %16 : vector<16x32xbf16> to vector<16x32xf32>
      %18 = arith.addf %15, %17 : vector<16x32xf32>
      %cst_16 = arith.constant dense<0.000000e+00> : vector<16xf32>
      %19 = vector.multi_reduction <add>, %18, %cst_16 [1] : vector<16x32xf32> to vector<16xf32>
      %20 = vector.shape_cast %19 : vector<16xf32> to vector<16x1xf32>
      %cst_17 = arith.constant 3.200000e+01 : f32
      %21 = vector.broadcast %cst_17 : f32 to vector<16x1xf32>
      %22 = arith.divf %20, %21 : vector<16x1xf32>
      %23 = vector.broadcast %22 : vector<16x1xf32> to vector<16x32xf32>
      %24 = arith.subf %18, %23 : vector<16x32xf32>
      %25 = arith.mulf %24, %24 : vector<16x32xf32>
      %cst_18 = arith.constant dense<0.000000e+00> : vector<16xf32>
      %26 = vector.multi_reduction <add>, %25, %cst_18 [1] : vector<16x32xf32> to vector<16xf32>
      %27 = vector.shape_cast %26 : vector<16xf32> to vector<16x1xf32>
      %cst_19 = arith.constant 3.200000e+01 : f32
      %28 = vector.broadcast %cst_19 : f32 to vector<16x1xf32>
      %29 = arith.divf %27, %28 : vector<16x1xf32>
      %30 = vector.broadcast %22 : vector<16x1xf32> to vector<16x32xf32>
      %31 = arith.subf %18, %30 : vector<16x32xf32>
      %cst_20 = arith.constant 9.99999996E-13 : f32
      %32 = vector.broadcast %cst_20 : f32 to vector<16x1xf32>
      %33 = arith.addf %29, %32 : vector<16x1xf32>
      %34 = math.rsqrt %33 : vector<16x1xf32>
      %35 = vector.broadcast %34 : vector<16x1xf32> to vector<16x32xf32>
      %36 = arith.mulf %31, %35 : vector<16x32xf32>
      %c0_21 = arith.constant 0 : index
      %c0_22 = arith.constant 0 : index
      %37 = vector.load %arg6[%c0_21, %c0_22] : memref<1x32xf32, #tpu.memory_space<vmem>>, vector<1x32xf32>
      %38 = vector.broadcast %37 : vector<1x32xf32> to vector<16x32xf32>
      %39 = arith.mulf %36, %38 : vector<16x32xf32>
      %c0_23 = arith.constant 0 : index
      %c0_24 = arith.constant 0 : index
      %40 = vector.load %arg7[%c0_23, %c0_24] : memref<1x32xf32, #tpu.memory_space<vmem>>, vector<1x32xf32>
      %41 = vector.broadcast %40 : vector<1x32xf32> to vector<16x32xf32>
      %42 = arith.addf %39, %41 : vector<16x32xf32>
      %43 = arith.truncf %42 : vector<16x32xf32> to vector<16x32xbf16>
      %c0_25 = arith.constant 0 : index
      %c0_26 = arith.constant 0 : index
      %44 = vector.load %arg8[%c0_25, %c0_26] : memref<16x32xbf16, #tpu.memory_space<vmem>>, vector<16x32xbf16>
      tpu.vector_store %arg8[%c0_25, %c0_26], %43 {strides = array<i32>} : memref<16x32xbf16, #tpu.memory_space<vmem>>, vector<16x32xbf16>,
    } else {
    }
    return
  }
  func.func @transform_0(%arg0: i32, %arg1: i32) -> (i32, i32) {
    %c0_i32 = arith.constant 0 : i32
    return %arg0, %arg1 : i32, i32
  }
  func.func @transform_1(%arg0: i32, %arg1: i32) -> (i32, i32) {
    %c0_i32 = arith.constant 0 : i32
    %c0_i32_0 = arith.constant 0 : i32
    return %arg1, %c0_i32 : i32, i32
  }
  func.func @transform_2(%arg0: i32, %arg1: i32) -> (i32, i32) {
    %c0_i32 = arith.constant 0 : i32
    %c0_i32_0 = arith.constant 0 : i32
    %c0_i32_1 = arith.constant 0 : i32
    return %c0_i32, %c0_i32_0 : i32, i32
  }
  func.func @transform_3(%arg0: i32, %arg1: i32) -> (i32, i32) {
    %c0_i32 = arith.constant 0 : i32
    %c0_i32_0 = arith.constant 0 : i32
    return %arg0, %c0_i32 : i32, i32
  }
  func.func @transform_4(%arg0: i32, %arg1: i32) -> (i32, i32) {
    %c0_i32 = arith.constant 0 : i32
    %c0_i32_0 = arith.constant 0 : i32
    %c0_i32_1 = arith.constant 0 : i32
    return %c0_i32, %c0_i32_0 : i32, i32
  }
  func.func @transform_5(%arg0: i32, %arg1: i32) -> (i32, i32) {
    %c0_i32 = arith.constant 0 : i32
    %c0_i32_0 = arith.constant 0 : i32
    %c0_i32_1 = arith.constant 0 : i32
    return %c0_i32, %c0_i32_0 : i32, i32
  }
  func.func @transform_6(%arg0: i32, %arg1: i32) -> (i32, i32) {
    %c0_i32 = arith.constant 0 : i32
    %c0_i32_0 = arith.constant 0 : i32
    return %arg0, %c0_i32 : i32, i32
  }
}

module attributes {stable_mosaic.version = 11 : i64} {
  func.func @_mm_kernel(%arg0: i32, %arg1: i32, %arg2: i32, %arg3: memref<16x32xbf16, #tpu.memory_space<vmem>>, %arg4: memref<32x64xbf16, #tpu.memory_space<vmem>>, %arg5: memref<1x64xf32, #tpu.memory_space<vmem>>, %arg6: memref<16x64xbf16, #tpu.memory_space<vmem>>, %arg7: memref<16x64xf32, #tpu.memory_space<vmem>>) attributes {dimension_semantics = [#tpu.dimension_semantics<parallel>, #tpu.dimension_semantics<parallel>, #tpu.dimension_semantics<arbitrary>], iteration_bounds = array<i64: 1, 1, 1>, scalar_prefetch = 0 : i64, scratch_operands = 1 : i64, tpu.core_type = #tpu.core_type<tc>, window_params = [{transform_indices = @transform_0, window_bounds = array<i64: 16, 32>}, {transform_indices = @transform_1, window_bounds = array<i64: 32, 64>}, {transform_indices = @transform_2, window_bounds = array<i64: 1, 64>}, {transform_indices = @transform_3, window_bounds = array<i64: 16, 64>}]} {
    %c0_i32 = arith.constant 0 : i32
    %0 = arith.cmpi eq, %arg2, %c0_i32 : i32
    %1 = arith.extui %0 : i1 to i32
    %c0_i32_0 = arith.constant 0 : i32
    %2 = arith.cmpi ne, %1, %c0_i32_0 : i32
    scf.if %2 {
      %cst_10 = arith.constant 0.000000e+00 : f32
      %12 = vector.broadcast %cst_10 : f32 to vector<16x64xf32>
      %c0_11 = arith.constant 0 : index
      %c0_12 = arith.constant 0 : index
      %13 = vector.load %arg7[%c0_11, %c0_12] : memref<16x64xf32, #tpu.memory_space<vmem>>, vector<16x64xf32>
      tpu.vector_store %arg7[%c0_11, %c0_12], %12 {strides = array<i32>} : memref<16x64xf32, #tpu.memory_space<vmem>>, vector<16x64xf32>,
    } else {
    }
    %c0 = arith.constant 0 : index
    %c0_1 = arith.constant 0 : index
    %3 = vector.load %arg7[%c0, %c0_1] : memref<16x64xf32, #tpu.memory_space<vmem>>, vector<16x64xf32>
    %c0_2 = arith.constant 0 : index
    %c0_3 = arith.constant 0 : index
    %4 = vector.load %arg3[%c0_2, %c0_3] : memref<16x32xbf16, #tpu.memory_space<vmem>>, vector<16x32xbf16>
    %c0_4 = arith.constant 0 : index
    %c0_5 = arith.constant 0 : index
    %5 = vector.load %arg4[%c0_4, %c0_5] : memref<32x64xbf16, #tpu.memory_space<vmem>>, vector<32x64xbf16>
    %cst = arith.constant dense<0.000000e+00> : vector<16x64xf32>
    %6 = tpu.matmul %4, %5, %cst {dimension_numbers = #tpu.dot_dimension_numbers<[1], [0], [0], [1], [0, 0, 1, 1], [], []>} : vector<16x32xbf16>, vector<32x64xbf16>, vector<16x64xf32> -> vector<16x64xf32>
    %7 = arith.addf %3, %6 : vector<16x64xf32>
    %c0_6 = arith.constant 0 : index
    %c0_7 = arith.constant 0 : index
    %8 = vector.load %arg7[%c0_6, %c0_7] : memref<16x64xf32, #tpu.memory_space<vmem>>, vector<16x64xf32>
    tpu.vector_store %arg7[%c0_6, %c0_7], %7 {strides = array<i32>} : memref<16x64xf32, #tpu.memory_space<vmem>>, vector<16x64xf32>,
    %c0_i32_8 = arith.constant 0 : i32
    %9 = arith.cmpi eq, %arg2, %c0_i32_8 : i32
    %10 = arith.extui %9 : i1 to i32
    %c0_i32_9 = arith.constant 0 : i32
    %11 = arith.cmpi ne, %10, %c0_i32_9 : i32
    scf.if %11 {
      %c0_10 = arith.constant 0 : index
      %c0_11 = arith.constant 0 : index
      %12 = vector.load %arg7[%c0_10, %c0_11] : memref<16x64xf32, #tpu.memory_space<vmem>>, vector<16x64xf32>
      %c0_12 = arith.constant 0 : index
      %c0_13 = arith.constant 0 : index
      %13 = vector.load %arg5[%c0_12, %c0_13] : memref<1x64xf32, #tpu.memory_space<vmem>>, vector<1x64xf32>
      %14 = vector.broadcast %13 : vector<1x64xf32> to vector<16x64xf32>
      %15 = arith.addf %12, %14 : vector<16x64xf32>
      %cst_14 = arith.constant 5.000000e-01 : f32
      %16 = vector.broadcast %cst_14 : f32 to vector<16x64xf32>
      %17 = arith.mulf %16, %15 : vector<16x64xf32>
      %cst_15 = arith.constant 4.471500e-02 : f32
      %18 = vector.broadcast %cst_15 : f32 to vector<16x64xf32>
      %19 = arith.mulf %18, %15 : vector<16x64xf32>
      %20 = arith.mulf %19, %15 : vector<16x64xf32>
      %21 = arith.mulf %20, %15 : vector<16x64xf32>
      %22 = arith.addf %15, %21 : vector<16x64xf32>
      %cst_16 = arith.constant 0.797884583 : f32
      %23 = vector.broadcast %cst_16 : f32 to vector<16x64xf32>
      %24 = arith.mulf %23, %22 : vector<16x64xf32>
      %25 = math.tanh %24 : vector<16x64xf32>
      %cst_17 = arith.constant 1.000000e+00 : f32
      %26 = vector.broadcast %cst_17 : f32 to vector<16x64xf32>
      %27 = arith.addf %26, %25 : vector<16x64xf32>
      %28 = arith.mulf %17, %27 : vector<16x64xf32>
      %29 = arith.truncf %28 : vector<16x64xf32> to vector<16x64xbf16>
      %c0_18 = arith.constant 0 : index
      %c0_19 = arith.constant 0 : index
      %30 = vector.load %arg6[%c0_18, %c0_19] : memref<16x64xbf16, #tpu.memory_space<vmem>>, vector<16x64xbf16>
      tpu.vector_store %arg6[%c0_18, %c0_19], %29 {strides = array<i32>} : memref<16x64xbf16, #tpu.memory_space<vmem>>, vector<16x64xbf16>,
    } else {
    }
    return
  }
  func.func @transform_0(%arg0: i32, %arg1: i32, %arg2: i32) -> (i32, i32) {
    %c0_i32 = arith.constant 0 : i32
    return %arg0, %arg2 : i32, i32
  }
  func.func @transform_1(%arg0: i32, %arg1: i32, %arg2: i32) -> (i32, i32) {
    %c0_i32 = arith.constant 0 : i32
    return %arg2, %arg1 : i32, i32
  }
  func.func @transform_2(%arg0: i32, %arg1: i32, %arg2: i32) -> (i32, i32) {
    %c0_i32 = arith.constant 0 : i32
    %c0_i32_0 = arith.constant 0 : i32
    return %c0_i32, %arg1 : i32, i32
  }
  func.func @transform_3(%arg0: i32, %arg1: i32, %arg2: i32) -> (i32, i32) {
    %c0_i32 = arith.constant 0 : i32
    return %arg0, %arg1 : i32, i32
  }
}

module attributes {stable_mosaic.version = 11 : i64} {
  func.func @_mm_res_ln_kernel(%arg0: i32, %arg1: i32, %arg2: memref<16x64xbf16, #tpu.memory_space<vmem>>, %arg3: memref<64x32xbf16, #tpu.memory_space<vmem>>, %arg4: memref<1x32xf32, #tpu.memory_space<vmem>>, %arg5: memref<16x32xbf16, #tpu.memory_space<vmem>>, %arg6: memref<1x32xf32, #tpu.memory_space<vmem>>, %arg7: memref<1x32xf32, #tpu.memory_space<vmem>>, %arg8: memref<16x32xbf16, #tpu.memory_space<vmem>>, %arg9: memref<16x32xf32, #tpu.memory_space<vmem>>) attributes {dimension_semantics = [#tpu.dimension_semantics<parallel>, #tpu.dimension_semantics<arbitrary>], iteration_bounds = array<i64: 1, 1>, scalar_prefetch = 0 : i64, scratch_operands = 1 : i64, tpu.core_type = #tpu.core_type<tc>, window_params = [{transform_indices = @transform_0, window_bounds = array<i64: 16, 64>}, {transform_indices = @transform_1, window_bounds = array<i64: 64, 32>}, {pipeline_mode = #tpu.pipeline_mode<synchronous>, transform_indices = @transform_2, window_bounds = array<i64: 1, 32>}, {transform_indices = @transform_3, window_bounds = array<i64: 16, 32>}, {pipeline_mode = #tpu.pipeline_mode<synchronous>, transform_indices = @transform_4, window_bounds = array<i64: 1, 32>}, {pipeline_mode = #tpu.pipeline_mode<synchronous>, transform_indices = @transform_5, window_bounds = array<i64: 1, 32>}, {transform_indices = @transform_6, window_bounds = array<i64: 16, 32>}]} {
    %c0_i32 = arith.constant 0 : i32
    %0 = arith.cmpi eq, %arg1, %c0_i32 : i32
    %1 = arith.extui %0 : i1 to i32
    %c0_i32_0 = arith.constant 0 : i32
    %2 = arith.cmpi ne, %1, %c0_i32_0 : i32
    scf.if %2 {
      %cst_10 = arith.constant 0.000000e+00 : f32
      %12 = vector.broadcast %cst_10 : f32 to vector<16x32xf32>
      %c0_11 = arith.constant 0 : index
      %c0_12 = arith.constant 0 : index
      %13 = vector.load %arg9[%c0_11, %c0_12] : memref<16x32xf32, #tpu.memory_space<vmem>>, vector<16x32xf32>
      tpu.vector_store %arg9[%c0_11, %c0_12], %12 {strides = array<i32>} : memref<16x32xf32, #tpu.memory_space<vmem>>, vector<16x32xf32>,
    } else {
    }
    %c0 = arith.constant 0 : index
    %c0_1 = arith.constant 0 : index
    %3 = vector.load %arg9[%c0, %c0_1] : memref<16x32xf32, #tpu.memory_space<vmem>>, vector<16x32xf32>
    %c0_2 = arith.constant 0 : index
    %c0_3 = arith.constant 0 : index
    %4 = vector.load %arg2[%c0_2, %c0_3] : memref<16x64xbf16, #tpu.memory_space<vmem>>, vector<16x64xbf16>
    %c0_4 = arith.constant 0 : index
    %c0_5 = arith.constant 0 : index
    %5 = vector.load %arg3[%c0_4, %c0_5] : memref<64x32xbf16, #tpu.memory_space<vmem>>, vector<64x32xbf16>
    %cst = arith.constant dense<0.000000e+00> : vector<16x32xf32>
    %6 = tpu.matmul %4, %5, %cst {dimension_numbers = #tpu.dot_dimension_numbers<[1], [0], [0], [1], [0, 0, 1, 1], [], []>} : vector<16x64xbf16>, vector<64x32xbf16>, vector<16x32xf32> -> vector<16x32xf32>
    %7 = arith.addf %3, %6 : vector<16x32xf32>
    %c0_6 = arith.constant 0 : index
    %c0_7 = arith.constant 0 : index
    %8 = vector.load %arg9[%c0_6, %c0_7] : memref<16x32xf32, #tpu.memory_space<vmem>>, vector<16x32xf32>
    tpu.vector_store %arg9[%c0_6, %c0_7], %7 {strides = array<i32>} : memref<16x32xf32, #tpu.memory_space<vmem>>, vector<16x32xf32>,
    %c0_i32_8 = arith.constant 0 : i32
    %9 = arith.cmpi eq, %arg1, %c0_i32_8 : i32
    %10 = arith.extui %9 : i1 to i32
    %c0_i32_9 = arith.constant 0 : i32
    %11 = arith.cmpi ne, %10, %c0_i32_9 : i32
    scf.if %11 {
      %c0_10 = arith.constant 0 : index
      %c0_11 = arith.constant 0 : index
      %12 = vector.load %arg9[%c0_10, %c0_11] : memref<16x32xf32, #tpu.memory_space<vmem>>, vector<16x32xf32>
      %c0_12 = arith.constant 0 : index
      %c0_13 = arith.constant 0 : index
      %13 = vector.load %arg4[%c0_12, %c0_13] : memref<1x32xf32, #tpu.memory_space<vmem>>, vector<1x32xf32>
      %14 = vector.broadcast %13 : vector<1x32xf32> to vector<16x32xf32>
      %15 = arith.addf %12, %14 : vector<16x32xf32>
      %c0_14 = arith.constant 0 : index
      %c0_15 = arith.constant 0 : index
      %16 = vector.load %arg5[%c0_14, %c0_15] : memref<16x32xbf16, #tpu.memory_space<vmem>>, vector<16x32xbf16>
      %17 = arith.extf %16 : vector<16x32xbf16> to vector<16x32xf32>
      %18 = arith.addf %15, %17 : vector<16x32xf32>
      %cst_16 = arith.constant dense<0.000000e+00> : vector<16xf32>
      %19 = vector.multi_reduction <add>, %18, %cst_16 [1] : vector<16x32xf32> to vector<16xf32>
      %20 = vector.shape_cast %19 : vector<16xf32> to vector<16x1xf32>
      %cst_17 = arith.constant 3.200000e+01 : f32
      %21 = vector.broadcast %cst_17 : f32 to vector<16x1xf32>
      %22 = arith.divf %20, %21 : vector<16x1xf32>
      %23 = vector.broadcast %22 : vector<16x1xf32> to vector<16x32xf32>
      %24 = arith.subf %18, %23 : vector<16x32xf32>
      %25 = arith.mulf %24, %24 : vector<16x32xf32>
      %cst_18 = arith.constant dense<0.000000e+00> : vector<16xf32>
      %26 = vector.multi_reduction <add>, %25, %cst_18 [1] : vector<16x32xf32> to vector<16xf32>
      %27 = vector.shape_cast %26 : vector<16xf32> to vector<16x1xf32>
      %cst_19 = arith.constant 3.200000e+01 : f32
      %28 = vector.broadcast %cst_19 : f32 to vector<16x1xf32>
      %29 = arith.divf %27, %28 : vector<16x1xf32>
      %30 = vector.broadcast %22 : vector<16x1xf32> to vector<16x32xf32>
      %31 = arith.subf %18, %30 : vector<16x32xf32>
      %cst_20 = arith.constant 9.99999996E-13 : f32
      %32 = vector.broadcast %cst_20 : f32 to vector<16x1xf32>
      %33 = arith.addf %29, %32 : vector<16x1xf32>
      %34 = math.rsqrt %33 : vector<16x1xf32>
      %35 = vector.broadcast %34 : vector<16x1xf32> to vector<16x32xf32>
      %36 = arith.mulf %31, %35 : vector<16x32xf32>
      %c0_21 = arith.constant 0 : index
      %c0_22 = arith.constant 0 : index
      %37 = vector.load %arg6[%c0_21, %c0_22] : memref<1x32xf32, #tpu.memory_space<vmem>>, vector<1x32xf32>
      %38 = vector.broadcast %37 : vector<1x32xf32> to vector<16x32xf32>
      %39 = arith.mulf %36, %38 : vector<16x32xf32>
      %c0_23 = arith.constant 0 : index
      %c0_24 = arith.constant 0 : index
      %40 = vector.load %arg7[%c0_23, %c0_24] : memref<1x32xf32, #tpu.memory_space<vmem>>, vector<1x32xf32>
      %41 = vector.broadcast %40 : vector<1x32xf32> to vector<16x32xf32>
      %42 = arith.addf %39, %41 : vector<16x32xf32>
      %43 = arith.truncf %42 : vector<16x32xf32> to vector<16x32xbf16>
      %c0_25 = arith.constant 0 : index
      %c0_26 = arith.constant 0 : index
      %44 = vector.load %arg8[%c0_25, %c0_26] : memref<16x32xbf16, #tpu.memory_space<vmem>>, vector<16x32xbf16>
      tpu.vector_store %arg8[%c0_25, %c0_26], %43 {strides = array<i32>} : memref<16x32xbf16, #tpu.memory_space<vmem>>, vector<16x32xbf16>,
    } else {
    }
    return
  }
  func.func @transform_0(%arg0: i32, %arg1: i32) -> (i32, i32) {
    %c0_i32 = arith.constant 0 : i32
    return %arg0, %arg1 : i32, i32
  }
  func.func @transform_1(%arg0: i32, %arg1: i32) -> (i32, i32) {
    %c0_i32 = arith.constant 0 : i32
    %c0_i32_0 = arith.constant 0 : i32
    return %arg1, %c0_i32 : i32, i32
  }
  func.func @transform_2(%arg0: i32, %arg1: i32) -> (i32, i32) {
    %c0_i32 = arith.constant 0 : i32
    %c0_i32_0 = arith.constant 0 : i32
    %c0_i32_1 = arith.constant 0 : i32
    return %c0_i32, %c0_i32_0 : i32, i32
  }
  func.func @transform_3(%arg0: i32, %arg1: i32) -> (i32, i32) {
    %c0_i32 = arith.constant 0 : i32
    %c0_i32_0 = arith.constant 0 : i32
    return %arg0, %c0_i32 : i32, i32
  }
  func.func @transform_4(%arg0: i32, %arg1: i32) -> (i32, i32) {
    %c0_i32 = arith.constant 0 : i32
    %c0_i32_0 = arith.constant 0 : i32
    %c0_i32_1 = arith.constant 0 : i32
    return %c0_i32, %c0_i32_0 : i32, i32
  }
  func.func @transform_5(%arg0: i32, %arg1: i32) -> (i32, i32) {
    %c0_i32 = arith.constant 0 : i32
    %c0_i32_0 = arith.constant 0 : i32
    %c0_i32_1 = arith.constant 0 : i32
    return %c0_i32, %c0_i32_0 : i32, i32
  }
  func.func @transform_6(%arg0: i32, %arg1: i32) -> (i32, i32) {
    %c0_i32 = arith.constant 0 : i32
    %c0_i32_0 = arith.constant 0 : i32
    return %arg0, %c0_i32 : i32, i32
  }
}

module attributes {stable_mosaic.version = 11 : i64} {
  func.func @_mm_kernel(%arg0: i32, %arg1: i32, %arg2: i32, %arg3: memref<2x32xbf16, #tpu.memory_space<vmem>>, %arg4: memref<32x32xbf16, #tpu.memory_space<vmem>>, %arg5: memref<1x32xf32, #tpu.memory_space<vmem>>, %arg6: memref<2x32xbf16, #tpu.memory_space<vmem>>, %arg7: memref<2x32xf32, #tpu.memory_space<vmem>>) attributes {dimension_semantics = [#tpu.dimension_semantics<parallel>, #tpu.dimension_semantics<parallel>, #tpu.dimension_semantics<arbitrary>], iteration_bounds = array<i64: 1, 1, 1>, scalar_prefetch = 0 : i64, scratch_operands = 1 : i64, tpu.core_type = #tpu.core_type<tc>, window_params = [{transform_indices = @transform_0, window_bounds = array<i64: 2, 32>}, {transform_indices = @transform_1, window_bounds = array<i64: 32, 32>}, {transform_indices = @transform_2, window_bounds = array<i64: 1, 32>}, {transform_indices = @transform_3, window_bounds = array<i64: 2, 32>}]} {
    %c0_i32 = arith.constant 0 : i32
    %0 = arith.cmpi eq, %arg2, %c0_i32 : i32
    %1 = arith.extui %0 : i1 to i32
    %c0_i32_0 = arith.constant 0 : i32
    %2 = arith.cmpi ne, %1, %c0_i32_0 : i32
    scf.if %2 {
      %cst_10 = arith.constant 0.000000e+00 : f32
      %12 = vector.broadcast %cst_10 : f32 to vector<2x32xf32>
      %c0_11 = arith.constant 0 : index
      %c0_12 = arith.constant 0 : index
      %13 = vector.load %arg7[%c0_11, %c0_12] : memref<2x32xf32, #tpu.memory_space<vmem>>, vector<2x32xf32>
      tpu.vector_store %arg7[%c0_11, %c0_12], %12 {strides = array<i32>} : memref<2x32xf32, #tpu.memory_space<vmem>>, vector<2x32xf32>,
    } else {
    }
    %c0 = arith.constant 0 : index
    %c0_1 = arith.constant 0 : index
    %3 = vector.load %arg7[%c0, %c0_1] : memref<2x32xf32, #tpu.memory_space<vmem>>, vector<2x32xf32>
    %c0_2 = arith.constant 0 : index
    %c0_3 = arith.constant 0 : index
    %4 = vector.load %arg3[%c0_2, %c0_3] : memref<2x32xbf16, #tpu.memory_space<vmem>>, vector<2x32xbf16>
    %c0_4 = arith.constant 0 : index
    %c0_5 = arith.constant 0 : index
    %5 = vector.load %arg4[%c0_4, %c0_5] : memref<32x32xbf16, #tpu.memory_space<vmem>>, vector<32x32xbf16>
    %cst = arith.constant dense<0.000000e+00> : vector<2x32xf32>
    %6 = tpu.matmul %4, %5, %cst {dimension_numbers = #tpu.dot_dimension_numbers<[1], [0], [0], [1], [0, 0, 1, 1], [], []>} : vector<2x32xbf16>, vector<32x32xbf16>, vector<2x32xf32> -> vector<2x32xf32>
    %7 = arith.addf %3, %6 : vector<2x32xf32>
    %c0_6 = arith.constant 0 : index
    %c0_7 = arith.constant 0 : index
    %8 = vector.load %arg7[%c0_6, %c0_7] : memref<2x32xf32, #tpu.memory_space<vmem>>, vector<2x32xf32>
    tpu.vector_store %arg7[%c0_6, %c0_7], %7 {strides = array<i32>} : memref<2x32xf32, #tpu.memory_space<vmem>>, vector<2x32xf32>,
    %c0_i32_8 = arith.constant 0 : i32
    %9 = arith.cmpi eq, %arg2, %c0_i32_8 : i32
    %10 = arith.extui %9 : i1 to i32
    %c0_i32_9 = arith.constant 0 : i32
    %11 = arith.cmpi ne, %10, %c0_i32_9 : i32
    scf.if %11 {
      %c0_10 = arith.constant 0 : index
      %c0_11 = arith.constant 0 : index
      %12 = vector.load %arg7[%c0_10, %c0_11] : memref<2x32xf32, #tpu.memory_space<vmem>>, vector<2x32xf32>
      %c0_12 = arith.constant 0 : index
      %c0_13 = arith.constant 0 : index
      %13 = vector.load %arg5[%c0_12, %c0_13] : memref<1x32xf32, #tpu.memory_space<vmem>>, vector<1x32xf32>
      %14 = vector.broadcast %13 : vector<1x32xf32> to vector<2x32xf32>
      %15 = arith.addf %12, %14 : vector<2x32xf32>
      %16 = math.tanh %15 : vector<2x32xf32>
      %17 = arith.truncf %16 : vector<2x32xf32> to vector<2x32xbf16>
      %c0_14 = arith.constant 0 : index
      %c0_15 = arith.constant 0 : index
      %18 = vector.load %arg6[%c0_14, %c0_15] : memref<2x32xbf16, #tpu.memory_space<vmem>>, vector<2x32xbf16>
      tpu.vector_store %arg6[%c0_14, %c0_15], %17 {strides = array<i32>} : memref<2x32xbf16, #tpu.memory_space<vmem>>, vector<2x32xbf16>,
    } else {
    }
    return
  }
  func.func @transform_0(%arg0: i32, %arg1: i32, %arg2: i32) -> (i32, i32) {
    %c0_i32 = arith.constant 0 : i32
    return %arg0, %arg2 : i32, i32
  }
  func.func @transform_1(%arg0: i32, %arg1: i32, %arg2: i32) -> (i32, i32) {
    %c0_i32 = arith.constant 0 : i32
    return %arg2, %arg1 : i32, i32
  }
  func.func @transform_2(%arg0: i32, %arg1: i32, %arg2: i32) -> (i32, i32) {
    %c0_i32 = arith.constant 0 : i32
    %c0_i32_0 = arith.constant 0 : i32
    return %c0_i32, %arg1 : i32, i32
  }
  func.func @transform_3(%arg0: i32, %arg1: i32, %arg2: i32) -> (i32, i32) {
    %c0_i32 = arith.constant 0 : i32
    return %arg0, %arg1 : i32, i32
  }
}

module attributes {stable_mosaic.version = 11 : i64} {
  func.func @_mm_kernel(%arg0: i32, %arg1: i32, %arg2: i32, %arg3: memref<2x32xbf16, #tpu.memory_space<vmem>>, %arg4: memref<32x5xbf16, #tpu.memory_space<vmem>>, %arg5: memref<1x5xf32, #tpu.memory_space<vmem>>, %arg6: memref<2x5xf32, #tpu.memory_space<vmem>>, %arg7: memref<2x5xf32, #tpu.memory_space<vmem>>) attributes {dimension_semantics = [#tpu.dimension_semantics<parallel>, #tpu.dimension_semantics<parallel>, #tpu.dimension_semantics<arbitrary>], iteration_bounds = array<i64: 1, 1, 1>, scalar_prefetch = 0 : i64, scratch_operands = 1 : i64, tpu.core_type = #tpu.core_type<tc>, window_params = [{transform_indices = @transform_0, window_bounds = array<i64: 2, 32>}, {transform_indices = @transform_1, window_bounds = array<i64: 32, 5>}, {transform_indices = @transform_2, window_bounds = array<i64: 1, 5>}, {transform_indices = @transform_3, window_bounds = array<i64: 2, 5>}]} {
    %c0_i32 = arith.constant 0 : i32
    %0 = arith.cmpi eq, %arg2, %c0_i32 : i32
    %1 = arith.extui %0 : i1 to i32
    %c0_i32_0 = arith.constant 0 : i32
    %2 = arith.cmpi ne, %1, %c0_i32_0 : i32
    scf.if %2 {
      %cst_10 = arith.constant 0.000000e+00 : f32
      %12 = vector.broadcast %cst_10 : f32 to vector<2x5xf32>
      %c0_11 = arith.constant 0 : index
      %c0_12 = arith.constant 0 : index
      %13 = vector.load %arg7[%c0_11, %c0_12] : memref<2x5xf32, #tpu.memory_space<vmem>>, vector<2x5xf32>
      tpu.vector_store %arg7[%c0_11, %c0_12], %12 {strides = array<i32>} : memref<2x5xf32, #tpu.memory_space<vmem>>, vector<2x5xf32>,
    } else {
    }
    %c0 = arith.constant 0 : index
    %c0_1 = arith.constant 0 : index
    %3 = vector.load %arg7[%c0, %c0_1] : memref<2x5xf32, #tpu.memory_space<vmem>>, vector<2x5xf32>
    %c0_2 = arith.constant 0 : index
    %c0_3 = arith.constant 0 : index
    %4 = vector.load %arg3[%c0_2, %c0_3] : memref<2x32xbf16, #tpu.memory_space<vmem>>, vector<2x32xbf16>
    %c0_4 = arith.constant 0 : index
    %c0_5 = arith.constant 0 : index
    %5 = vector.load %arg4[%c0_4, %c0_5] : memref<32x5xbf16, #tpu.memory_space<vmem>>, vector<32x5xbf16>
    %cst = arith.constant dense<0.000000e+00> : vector<2x5xf32>
    %6 = tpu.matmul %4, %5, %cst {dimension_numbers = #tpu.dot_dimension_numbers<[1], [0], [0], [1], [0, 0, 1, 1], [], []>} : vector<2x32xbf16>, vector<32x5xbf16>, vector<2x5xf32> -> vector<2x5xf32>
    %7 = arith.addf %3, %6 : vector<2x5xf32>
    %c0_6 = arith.constant 0 : index
    %c0_7 = arith.constant 0 : index
    %8 = vector.load %arg7[%c0_6, %c0_7] : memref<2x5xf32, #tpu.memory_space<vmem>>, vector<2x5xf32>
    tpu.vector_store %arg7[%c0_6, %c0_7], %7 {strides = array<i32>} : memref<2x5xf32, #tpu.memory_space<vmem>>, vector<2x5xf32>,
    %c0_i32_8 = arith.constant 0 : i32
    %9 = arith.cmpi eq, %arg2, %c0_i32_8 : i32
    %10 = arith.extui %9 : i1 to i32
    %c0_i32_9 = arith.constant 0 : i32
    %11 = arith.cmpi ne, %10, %c0_i32_9 : i32
    scf.if %11 {
      %c0_10 = arith.constant 0 : index
      %c0_11 = arith.constant 0 : index
      %12 = vector.load %arg7[%c0_10, %c0_11] : memref<2x5xf32, #tpu.memory_space<vmem>>, vector<2x5xf32>
      %c0_12 = arith.constant 0 : index
      %c0_13 = arith.constant 0 : index
      %13 = vector.load %arg5[%c0_12, %c0_13] : memref<1x5xf32, #tpu.memory_space<vmem>>, vector<1x5xf32>
      %14 = vector.broadcast %13 : vector<1x5xf32> to vector<2x5xf32>
      %15 = arith.addf %12, %14 : vector<2x5xf32>
      %c0_14 = arith.constant 0 : index
      %c0_15 = arith.constant 0 : index
      %16 = vector.load %arg6[%c0_14, %c0_15] : memref<2x5xf32, #tpu.memory_space<vmem>>, vector<2x5xf32>
      tpu.vector_store %arg6[%c0_14, %c0_15], %15 {strides = array<i32>} : memref<2x5xf32, #tpu.memory_space<vmem>>, vector<2x5xf32>,
    } else {
    }
    return
  }
  func.func @transform_0(%arg0: i32, %arg1: i32, %arg2: i32) -> (i32, i32) {
    %c0_i32 = arith.constant 0 : i32
    return %arg0, %arg2 : i32, i32
  }
  func.func @transform_1(%arg0: i32, %arg1: i32, %arg2: i32) -> (i32, i32) {
    %c0_i32 = arith.constant 0 : i32
    return %arg2, %arg1 : i32, i32
  }
  func.func @transform_2(%arg0: i32, %arg1: i32, %arg2: i32) -> (i32, i32) {
    %c0_i32 = arith.constant 0 : i32
    %c0_i32_0 = arith.constant 0 : i32
    return %c0_i32, %arg1 : i32, i32
  }
  func.func @transform_3(%arg0: i32, %arg1: i32, %arg2: i32) -> (i32, i32) {
    %c0_i32 = arith.constant 0 : i32
    return %arg0, %arg1 : i32, i32
  }
}

</mosaic_0001>

<llo_original>
// kernel: bert_forward.13
$region0: #{bert_forward.13}
  #allocation0 [shape = 'u32[]', space=smem, size = 0x4, offset = 0x4, fixed_abs, tag = 'smem constant byte address 0x4 - core index']
  #allocation1 [shape = 'u32[144,128]{1,0:T(1,128)}', space=vmem, size = 0x12000, scoped, tag = 'internal scratch']
  %s0 = inlined_call_operand.vmem [shape: bf16[16,32], index: 0, kind: input, shape index: {}]
  %s1 = inlined_call_operand.vmem [shape: f32[1,32], index: 1, kind: input, shape index: {}]
  %s2 = inlined_call_operand.vmem [shape: f32[1,32], index: 2, kind: input, shape index: {}]
  %s3 = inlined_call_operand.vmem [shape: bf16[16,32], index: 3, kind: output, shape index: {}]
  %s4 = sld [smem:[#allocation0]]
  $region22: #{bert_forward.13} parent=0
    _
  %s6 = ssub.s32 1, %s4
  %s7 = scalar_select 0, %s6, %s4
  // Predicated region
  $region2: #{bert_forward.13} parent=0 // pred_check
    _
  $region3: #{bert_forward.13} parent=0 // pred_check_branch
    %9 = sbr.rel (0) target = $region5
  $region4: #{bert_forward.13} parent=0 // pred_region
    _
  $region5: #{bert_forward.13} parent=0 // pred_fallthru
    _
  // Predicated region
  $region6: #{bert_forward.13} parent=0 // pred_check
    _
  $region7: #{bert_forward.13} parent=0 // pred_check_branch
    %11 = sbr.rel (0) target = $region9
  $region8: #{bert_forward.13} parent=0 // pred_region
    _
  $region9: #{bert_forward.13} parent=0 // pred_fallthru
    _
  // Predicated region
  $region10: #{bert_forward.13} parent=0 // pred_check
    _
  $region11: #{bert_forward.13} parent=0 // pred_check_branch
    %13 = sbr.rel (0) target = $region13
  $region12: #{bert_forward.13} parent=0 // pred_region
    _
  $region13: #{bert_forward.13} parent=0 // pred_fallthru
    _
  %v14 = vld [vmem:[%s0] sm:$0xf]
  %v15 = vld [vmem:[%s0 + $0x4] sm:$0xf]
  %v16 = vunpack.c.l.bf16 %v14
  %v17 = vunpack.c.l.bf16 %v15
  %vm18 = vcmask 261120
  %v19 = vsel %vm18, %v16, 0.0
  %20 = vadd.xlane.f32.xlu0 %v19
  %v21 = vpop.xlane.xlu0 %20
  %v22 = vsel %vm18, %v17, 0.0
  %23 = vadd.xlane.f32.xlu0 %v22
  %v24 = vpop.xlane.xlu0 %23
  %v25 = vrcp.pop 32.0
  %v26 = vmul.f32 %v21, %v25
  %v27 = vmul.f32 %v24, %v25
  %v28 = vsub.f32 %v16, %v26
  %v29 = vsub.f32 %v17, %v27
  %v30 = vmul.f32 %v28, %v28
  %v31 = vmul.f32 %v29, %v29
  %v32 = vsel %vm18, %v30, 0.0
  %33 = vadd.xlane.f32.xlu0 %v32
  %v34 = vpop.xlane.xlu0 %33
  %v35 = vsel %vm18, %v31, 0.0
  %36 = vadd.xlane.f32.xlu0 %v35
  %v37 = vpop.xlane.xlu0 %36
  %v38 = vmul.f32 %v34, %v25
  %v39 = vmul.f32 %v37, %v25
  %v40 = vadd.f32 %v38, 1e-12
  %v41 = vadd.f32 %v39, 1e-12
  %v42 = vrsqrt.pop %v40
  %v43 = vrsqrt.pop %v41
  %v44 = vmul.f32 %v28, %v42
  %v45 = vmul.f32 %v29, %v43
  %v46 = vld [vmem:[%s1] sm:$0x1]
  %v48 = vlaneseq
  %v49 = vshrl.u32 %v48, 7
  %v50 = vsub.s32 0, %v49
  %v51 = vrot.slane %v46, %v50
  %v53 = vmul.f32 %v44, %v51
  %v54 = vmul.f32 %v45, %v51
  %v55 = vld [vmem:[%s2] sm:$0x1]
  %v57 = vlaneseq
  %v58 = vshrl.u32 %v57, 7
  %v59 = vsub.s32 0, %v58
  %v60 = vrot.slane %v55, %v59
  %v62 = vadd.f32 %v53, %v60
  %v63 = vadd.f32 %v54, %v60
  %v64 = vpack.c.bf16 %v63, %v62
  %v66 = vunpack.c.l.b16 %v64
  %v67 = vunpack.c.h.b16 %v64
  %v68 = vpack.c.b16 %v66, %v66
  %v69 = vpack.c.b16 %v67, %v67
  %vm72 = vcmask 257024
  %73 = vst.msk [vmem:[%s3] sm:$0xf] %vm72, %v68
  %74 = vst.msk [vmem:[%s3 + $0x4] sm:$0xf] %vm72, %v69
  // Predicated region
  $region14: #{bert_forward.13} parent=0 // pred_check
    _
  $region15: #{bert_forward.13} parent=0 // pred_check_branch
    %76 = sbr.rel (0) target = $region17
  $region16: #{bert_forward.13} parent=0 // pred_region
    _
  $region17: #{bert_forward.13} parent=0 // pred_fallthru
    _
  // Predicated region
  $region18: #{bert_forward.13} parent=0 // pred_check
    _
  $region19: #{bert_forward.13} parent=0 // pred_check_branch
    %78 = sbr.rel (0) target = $region21
  $region20: #{bert_forward.13} parent=0 // pred_region
    _
  $region21: #{bert_forward.13} parent=0 // pred_fallthru
    _

// kernel: bert_forward.14
$region0: #{bert_forward.14}
  #allocation0 [shape = 'u32[]', space=smem, size = 0x4, offset = 0x4, fixed_abs, tag = 'smem constant byte address 0x4 - core index']
  #allocation1 [shape = 'u32[144,128]{1,0:T(1,128)}', space=vmem, size = 0x12000, scoped, tag = 'internal scratch']
  #allocation2 [shape = 'f32[16,96]{1,0:T(8,128)}', space=vmem, size = 0x2000, scoped, tag = 'scratch operand']
  %s0 = inlined_call_operand.vmem [shape: bf16[16,32], index: 0, kind: input, shape index: {}]
  %s1 = inlined_call_operand.vmem [shape: bf16[32,96], index: 1, kind: input, shape index: {}]
  %s2 = inlined_call_operand.vmem [shape: f32[1,96], index: 2, kind: input, shape index: {}]
  %s3 = inlined_call_operand.vmem [shape: bf16[16,96], index: 3, kind: output, shape index: {}]
  %s4 = sld [smem:[#allocation0]]
  $region30: #{bert_forward.14} parent=0
    _
  %s6 = ssub.s32 1, %s4
  %s7 = scalar_select 0, %s6, %s4
  // Predicated region
  $region2: #{bert_forward.14} parent=0 // pred_check
    _
  $region3: #{bert_forward.14} parent=0 // pred_check_branch
    %9 = sbr.rel (0) target = $region5
  $region4: #{bert_forward.14} parent=0 // pred_region
    _
  $region5: #{bert_forward.14} parent=0 // pred_fallthru
    _
  // Predicated region
  $region6: #{bert_forward.14} parent=0 // pred_check
    _
  $region7: #{bert_forward.14} parent=0 // pred_check_branch
    %11 = sbr.rel (0) target = $region9
  $region8: #{bert_forward.14} parent=0 // pred_region
    _
  $region9: #{bert_forward.14} parent=0 // pred_fallthru
    _
  // Predicated region
  $region10: #{bert_forward.14} parent=0 // pred_check
    _
  $region11: #{bert_forward.14} parent=0 // pred_check_branch
    %13 = sbr.rel (0) target = $region13
  $region12: #{bert_forward.14} parent=0 // pred_region
    _
  $region13: #{bert_forward.14} parent=0 // pred_fallthru
    _
  %p15 = scmp.eq.s32.totalorder 0, 0
  // Predicated region
  $region14: #{bert_forward.14} parent=0 // pred_check
    %p16 = pneg %p15
  $region15: #{bert_forward.14} parent=0 // pred_check_branch
    %18 = sbr.rel (%p16) target = $region17
  $region16: #{bert_forward.14} parent=0 // pred_region
    %vm19 = vcmask 785408
    %20 = vst.msk [vmem:[#allocation2] sm:$0xff] %vm19, 0.0
    %21 = vst.msk [vmem:[#allocation2 + $0x8] sm:$0xff] %vm19, 0.0
  $region17: #{bert_forward.14} parent=0 // pred_fallthru
    _
  %v22 = vld [vmem:[#allocation2] sm:$0xff]
  %v23 = vld [vmem:[#allocation2 + $0x8] sm:$0xff]
  %v24 = vld [vmem:[%s0] sm:$0xf]
  %v25 = vld [vmem:[%s0 + $0x4] sm:$0xf]
  %v26 = vld [vmem:[%s1] sm:$0xf]
  %v27 = vld [vmem:[%s1 + $0x4] sm:$0xf]
  %v28 = vld [vmem:[%s1 + $0x8] sm:$0xf]
  %v29 = vld [vmem:[%s1 + $0xc] sm:$0xf]
  %v32 = vunpack.c.l.b16 %v24
  %v33 = vunpack.c.l.b16 %v25
  %v34 = vpack.c.b16 %v33, %v32
  %v39 = vunpack.c.l.b16 %v26
  %v40 = vunpack.c.l.b16 %v27
  %v41 = vunpack.c.l.b16 %v28
  %v42 = vunpack.c.l.b16 %v29
  %v43 = vpack.c.b16 %v40, %v39
  %v44 = vpack.c.b16 %v42, %v41
  %vm47 = vcmask 261120
  %v49 = vsel %vm47, %v34, 0
  %51 = vmatprep.subr.bf16.mxu0 0
  %52 = vmatpush1.bf16.msra.mxu0 %v43
  %53 = vmatprep.subr.bf16.mxu0 0
  %54 = vmatpush1.bf16.msra.mxu0 %v44
  %55 = vmatprep.subr.bf16.mxu0 0
  %56 = vmatpush1.bf16.msra.mxu0 0
  %57 = vmatprep.subr.bf16.mxu0 0
  %58 = vmatpush1.bf16.msra.mxu0 0
  %59 = vmatprep.subr.bf16.mxu0 0
  %60 = vmatpush1.bf16.msra.mxu0 0
  %61 = vmatprep.subr.bf16.mxu0 0
  %62 = vmatpush1.bf16.msra.mxu0 0
  %63 = vmatprep.subr.bf16.mxu0 0
  %64 = vmatpush1.bf16.msra.mxu0 0
  %65 = vmatprep.subr.bf16.mxu0 0
  %66 = vmatpush1.bf16.msra.mxu0 0
  %67 = vmatprep.subr.bf16.mxu0 0
  %68 = vmatpush1.bf16.msra.mxu0 0
  %69 = vmatprep.subr.bf16.mxu0 0
  %70 = vmatpush1.bf16.msra.mxu0 0
  %71 = vmatprep.subr.bf16.mxu0 0
  %72 = vmatpush1.bf16.msra.mxu0 0
  %73 = vmatprep.subr.bf16.mxu0 0
  %74 = vmatpush1.bf16.msra.mxu0 0
  %75 = vmatprep.subr.bf16.mxu0 0
  %76 = vmatpush1.bf16.msra.mxu0 0
  %77 = vmatprep.subr.bf16.mxu0 0
  %78 = vmatpush1.bf16.msra.mxu0 0
  %79 = vmatprep.subr.bf16.mxu0 0
  %80 = vmatpush1.bf16.msra.mxu0 0
  %81 = vmatprep.subr.bf16.mxu0 0
  %82 = vmatpush1.bf16.msra.mxu0 0
  %83 = vmatprep.mubr.bf16.mxu0 0
  %84 = vmatmul.mubr.bf16.gmra.mrb[0].mxu0 %v49
  %v85 = vpop.f32.mrb[0].mxu0
  %v86 = vadd.f32 0.0, %v85
  %v87 = vpop.f32.mrb[0].mxu0
  %v88 = vpop.f32.mrb[0].mxu0
  %v89 = vadd.f32 0.0, %v88
  %v90 = vpop.f32.mrb[0].mxu0
  %91 = vdwg.mxu0
  %v92 = vadd.f32 %v22, %v86
  %v93 = vadd.f32 %v23, %v89
  %vm94 = vcmask 785408
  %95 = vst.msk [vmem:[#allocation2] sm:$0xff] %vm94, %v92
  %96 = vst.msk [vmem:[#allocation2 + $0x8] sm:$0xff] %vm94, %v93
  // Predicated region
  $region18: #{bert_forward.14} parent=0 // pred_check
    %p97 = pneg %p15
  $region19: #{bert_forward.14} parent=0 // pred_check_branch
    %99 = sbr.rel (%p97) target = $region21
  $region20: #{bert_forward.14} parent=0 // pred_region
    %v100 = vld [vmem:[#allocation2] sm:$0xff]
    %v101 = vld [vmem:[#allocation2 + $0x8] sm:$0xff]
    %v102 = vld [vmem:[%s2] sm:$0x1]
    %v104 = vlaneseq
    %v105 = vshrl.u32 %v104, 7
    %v106 = vsub.s32 0, %v105
    %v107 = vrot.slane %v102, %v106
    %v109 = vadd.f32 %v100, %v107
    %v110 = vadd.f32 %v101, %v107
    %v111 = vpack.c.bf16 %v110, %v109
    %v113 = vunpack.c.l.b16 %v111
    %v114 = vunpack.c.h.b16 %v111
    %v115 = vpack.c.b16 %v113, %v113
    %v116 = vpack.c.b16 %v114, %v114
    %vm119 = vcmask 781312
    %120 = vst.msk [vmem:[%s3] sm:$0xf] %vm119, %v115
    %121 = vst.msk [vmem:[%s3 + $0x4] sm:$0xf] %vm119, %v116
  $region21: #{bert_forward.14} parent=0 // pred_fallthru
    _
  // Predicated region
  $region22: #{bert_forward.14} parent=0 // pred_check
    _
  $region23: #{bert_forward.14} parent=0 // pred_check_branch
    %123 = sbr.rel (0) target = $region25
  $region24: #{bert_forward.14} parent=0 // pred_region
    _
  $region25: #{bert_forward.14} parent=0 // pred_fallthru
    _
  // Predicated region
  $region26: #{bert_forward.14} parent=0 // pred_check
    _
  $region27: #{bert_forward.14} parent=0 // pred_check_branch
    %125 = sbr.rel (0) target = $region29
  $region28: #{bert_forward.14} parent=0 // pred_region
    _
  $region29: #{bert_forward.14} parent=0 // pred_fallthru
    _

// kernel: bert_forward.16
$region0: #{bert_forward.16}
  #allocation0 [shape = 'u32[]', space=smem, size = 0x4, offset = 0x4, fixed_abs, tag = 'smem constant byte address 0x4 - core index']
  #allocation1 [shape = 'u32[144,128]{1,0:T(1,128)}', space=vmem, size = 0x12000, scoped, tag = 'internal scratch']
  #allocation2 [shape = 'f32[16,32]{1,0:T(8,128)}', space=vmem, size = 0x2000, scoped, tag = 'scratch operand']
  %s0 = inlined_call_operand.vmem [shape: bf16[16,32], index: 0, kind: input, shape index: {}]
  %s1 = inlined_call_operand.vmem [shape: bf16[32,32], index: 1, kind: input, shape index: {}]
  %s2 = inlined_call_operand.vmem [shape: f32[1,32], index: 2, kind: input, shape index: {}]
  %s3 = inlined_call_operand.vmem [shape: bf16[16,32], index: 3, kind: input, shape index: {}]
  %s4 = inlined_call_operand.vmem [shape: f32[1,32], index: 4, kind: input, shape index: {}]
  %s5 = inlined_call_operand.vmem [shape: f32[1,32], index: 5, kind: input, shape index: {}]
  %s6 = inlined_call_operand.vmem [shape: bf16[16,32], index: 6, kind: output, shape index: {}]
  %s7 = sld [smem:[#allocation0]]
  $region42: #{bert_forward.16} parent=0
    _
  %s9 = ssub.s32 1, %s7
  %s10 = scalar_select 0, %s9, %s7
  // Predicated region
  $region2: #{bert_forward.16} parent=0 // pred_check
    _
  $region3: #{bert_forward.16} parent=0 // pred_check_branch
    %12 = sbr.rel (0) target = $region5
  $region4: #{bert_forward.16} parent=0 // pred_region
    _
  $region5: #{bert_forward.16} parent=0 // pred_fallthru
    _
  // Predicated region
  $region6: #{bert_forward.16} parent=0 // pred_check
    _
  $region7: #{bert_forward.16} parent=0 // pred_check_branch
    %14 = sbr.rel (0) target = $region9
  $region8: #{bert_forward.16} parent=0 // pred_region
    _
  $region9: #{bert_forward.16} parent=0 // pred_fallthru
    _
  // Predicated region
  $region10: #{bert_forward.16} parent=0 // pred_check
    _
  $region11: #{bert_forward.16} parent=0 // pred_check_branch
    %16 = sbr.rel (0) target = $region13
  $region12: #{bert_forward.16} parent=0 // pred_region
    _
  $region13: #{bert_forward.16} parent=0 // pred_fallthru
    _
  // Predicated region
  $region14: #{bert_forward.16} parent=0 // pred_check
    _
  $region15: #{bert_forward.16} parent=0 // pred_check_branch
    %18 = sbr.rel (0) target = $region17
  $region16: #{bert_forward.16} parent=0 // pred_region
    _
  $region17: #{bert_forward.16} parent=0 // pred_fallthru
    _
  // Predicated region
  $region18: #{bert_forward.16} parent=0 // pred_check
    _
  $region19: #{bert_forward.16} parent=0 // pred_check_branch
    %20 = sbr.rel (0) target = $region21
  $region20: #{bert_forward.16} parent=0 // pred_region
    _
  $region21: #{bert_forward.16} parent=0 // pred_fallthru
    _
  // Predicated region
  $region22: #{bert_forward.16} parent=0 // pred_check
    _
  $region23: #{bert_forward.16} parent=0 // pred_check_branch
    %22 = sbr.rel (0) target = $region25
  $region24: #{bert_forward.16} parent=0 // pred_region
    _
  $region25: #{bert_forward.16} parent=0 // pred_fallthru
    _
  %p24 = scmp.eq.s32.totalorder 0, 0
  // Predicated region
  $region26: #{bert_forward.16} parent=0 // pred_check
    %p25 = pneg %p24
  $region27: #{bert_forward.16} parent=0 // pred_check_branch
    %27 = sbr.rel (%p25) target = $region29
  $region28: #{bert_forward.16} parent=0 // pred_region
    %vm28 = vcmask 261120
    %29 = vst.msk [vmem:[#allocation2] sm:$0xff] %vm28, 0.0
    %30 = vst.msk [vmem:[#allocation2 + $0x8] sm:$0xff] %vm28, 0.0
  $region29: #{bert_forward.16} parent=0 // pred_fallthru
    _
  %v31 = vld [vmem:[#allocation2] sm:$0xff]
  %v32 = vld [vmem:[#allocation2 + $0x8] sm:$0xff]
  %v33 = vld [vmem:[%s0] sm:$0xf]
  %v34 = vld [vmem:[%s0 + $0x4] sm:$0xf]
  %v35 = vld [vmem:[%s1] sm:$0xf]
  %v36 = vld [vmem:[%s1 + $0x4] sm:$0xf]
  %v37 = vld [vmem:[%s1 + $0x8] sm:$0xf]
  %v38 = vld [vmem:[%s1 + $0xc] sm:$0xf]
  %v41 = vunpack.c.l.b16 %v33
  %v42 = vunpack.c.l.b16 %v34
  %v43 = vpack.c.b16 %v42, %v41
  %v48 = vunpack.c.l.b16 %v35
  %v49 = vunpack.c.l.b16 %v36
  %v50 = vunpack.c.l.b16 %v37
  %v51 = vunpack.c.l.b16 %v38
  %v52 = vpack.c.b16 %v49, %v48
  %v53 = vpack.c.b16 %v51, %v50
  %vm56 = vcmask 261120
  %v58 = vsel %vm56, %v43, 0
  %60 = vmatprep.subr.bf16.mxu0 0
  %61 = vmatpush1.bf16.msra.mxu0 %v52
  %62 = vmatprep.subr.bf16.mxu0 0
  %63 = vmatpush1.bf16.msra.mxu0 %v53
  %64 = vmatprep.subr.bf16.mxu0 0
  %65 = vmatpush1.bf16.msra.mxu0 0
  %66 = vmatprep.subr.bf16.mxu0 0
  %67 = vmatpush1.bf16.msra.mxu0 0
  %68 = vmatprep.subr.bf16.mxu0 0
  %69 = vmatpush1.bf16.msra.mxu0 0
  %70 = vmatprep.subr.bf16.mxu0 0
  %71 = vmatpush1.bf16.msra.mxu0 0
  %72 = vmatprep.subr.bf16.mxu0 0
  %73 = vmatpush1.bf16.msra.mxu0 0
  %74 = vmatprep.subr.bf16.mxu0 0
  %75 = vmatpush1.bf16.msra.mxu0 0
  %76 = vmatprep.subr.bf16.mxu0 0
  %77 = vmatpush1.bf16.msra.mxu0 0
  %78 = vmatprep.subr.bf16.mxu0 0
  %79 = vmatpush1.bf16.msra.mxu0 0
  %80 = vmatprep.subr.bf16.mxu0 0
  %81 = vmatpush1.bf16.msra.mxu0 0
  %82 = vmatprep.subr.bf16.mxu0 0
  %83 = vmatpush1.bf16.msra.mxu0 0
  %84 = vmatprep.subr.bf16.mxu0 0
  %85 = vmatpush1.bf16.msra.mxu0 0
  %86 = vmatprep.subr.bf16.mxu0 0
  %87 = vmatpush1.bf16.msra.mxu0 0
  %88 = vmatprep.subr.bf16.mxu0 0
  %89 = vmatpush1.bf16.msra.mxu0 0
  %90 = vmatprep.subr.bf16.mxu0 0
  %91 = vmatpush1.bf16.msra.mxu0 0
  %92 = vmatprep.mubr.bf16.mxu0 0
  %93 = vmatmul.mubr.bf16.gmra.mrb[0].mxu0 %v58
  %v94 = vpop.f32.mrb[0].mxu0
  %v95 = vadd.f32 0.0, %v94
  %v96 = vpop.f32.mrb[0].mxu0
  %v97 = vpop.f32.mrb[0].mxu0
  %v98 = vadd.f32 0.0, %v97
  %v99 = vpop.f32.mrb[0].mxu0
  %100 = vdwg.mxu0
  %v101 = vadd.f32 %v31, %v95
  %v102 = vadd.f32 %v32, %v98
  %103 = vst.msk [vmem:[#allocation2] sm:$0xff] %vm56, %v101
  %104 = vst.msk [vmem:[#allocation2 + $0x8] sm:$0xff] %vm56, %v102
  // Predicated region
  $region30: #{bert_forward.16} parent=0 // pred_check
    %p105 = pneg %p24
  $region31: #{bert_forward.16} parent=0 // pred_check_branch
    %107 = sbr.rel (%p105) target = $region33
  $region32: #{bert_forward.16} parent=0 // pred_region
    %v108 = vld [vmem:[#allocation2] sm:$0xff]
    %v109 = vld [vmem:[#allocation2 + $0x8] sm:$0xff]
    %v110 = vld [vmem:[%s2] sm:$0x1]
    %v112 = vlaneseq
    %v113 = vshrl.u32 %v112, 7
    %v114 = vsub.s32 0, %v113
    %v115 = vrot.slane %v110, %v114
    %v117 = vadd.f32 %v108, %v115
    %v118 = vadd.f32 %v109, %v115
    %v119 = vld [vmem:[%s3] sm:$0xf]
    %v120 = vld [vmem:[%s3 + $0x4] sm:$0xf]
    %v121 = vunpack.c.l.bf16 %v119
    %v122 = vunpack.c.l.bf16 %v120
    %v123 = vadd.f32 %v117, %v121
    %v124 = vadd.f32 %v118, %v122
    %v125 = vsel %vm56, %v123, 0.0
    %126 = vadd.xlane.f32.xlu0 %v125
    %v127 = vpop.xlane.xlu0 %126
    %v128 = vsel %vm56, %v124, 0.0
    %129 = vadd.xlane.f32.xlu0 %v128
    %v130 = vpop.xlane.xlu0 %129
    %v131 = vrcp.pop 32.0
    %v132 = vmul.f32 %v127, %v131
    %v133 = vmul.f32 %v130, %v131
    %v134 = vsub.f32 %v123, %v132
    %v135 = vsub.f32 %v124, %v133
    %v136 = vmul.f32 %v134, %v134
    %v137 = vmul.f32 %v135, %v135
    %v138 = vsel %vm56, %v136, 0.0
    %139 = vadd.xlane.f32.xlu0 %v138
    %v140 = vpop.xlane.xlu0 %139
    %v141 = vsel %vm56, %v137, 0.0
    %142 = vadd.xlane.f32.xlu0 %v141
    %v143 = vpop.xlane.xlu0 %142
    %v144 = vmul.f32 %v140, %v131
    %v145 = vmul.f32 %v143, %v131
    %v146 = vadd.f32 %v144, 1e-12
    %v147 = vadd.f32 %v145, 1e-12
    %v148 = vrsqrt.pop %v146
    %v149 = vrsqrt.pop %v147
    %v150 = vmul.f32 %v134, %v148
    %v151 = vmul.f32 %v135, %v149
    %v152 = vld [vmem:[%s4] sm:$0x1]
    %v154 = vlaneseq
    %v155 = vshrl.u32 %v154, 7
    %v156 = vsub.s32 0, %v155
    %v157 = vrot.slane %v152, %v156
    %v159 = vmul.f32 %v150, %v157
    %v160 = vmul.f32 %v151, %v157
    %v161 = vld [vmem:[%s5] sm:$0x1]
    %v163 = vlaneseq
    %v164 = vshrl.u32 %v163, 7
    %v165 = vsub.s32 0, %v164
    %v166 = vrot.slane %v161, %v165
    %v168 = vadd.f32 %v159, %v166
    %v169 = vadd.f32 %v160, %v166
    %v170 = vpack.c.bf16 %v169, %v168
    %v172 = vunpack.c.l.b16 %v170
    %v173 = vunpack.c.h.b16 %v170
    %v174 = vpack.c.b16 %v172, %v172
    %v175 = vpack.c.b16 %v173, %v173
    %vm178 = vcmask 257024
    %179 = vst.msk [vmem:[%s6] sm:$0xf] %vm178, %v174
    %180 = vst.msk [vmem:[%s6 + $0x4] sm:$0xf] %vm178, %v175
  $region33: #{bert_forward.16} parent=0 // pred_fallthru
    _
  // Predicated region
  $region34: #{bert_forward.16} parent=0 // pred_check
    _
  $region35: #{bert_forward.16} parent=0 // pred_check_branch
    %182 = sbr.rel (0) target = $region37
  $region36: #{bert_forward.16} parent=0 // pred_region
    _
  $region37: #{bert_forward.16} parent=0 // pred_fallthru
    _
  // Predicated region
  $region38: #{bert_forward.16} parent=0 // pred_check
    _
  $region39: #{bert_forward.16} parent=0 // pred_check_branch
    %184 = sbr.rel (0) target = $region41
  $region40: #{bert_forward.16} parent=0 // pred_region
    _
  $region41: #{bert_forward.16} parent=0 // pred_fallthru
    _

// kernel: bert_forward.15
$region0: #{bert_forward.15}
  #allocation0 [shape = 'u32[]', space=smem, size = 0x4, offset = 0x4, fixed_abs, tag = 'smem constant byte address 0x4 - core index']
  #allocation1 [shape = 'u32[144,128]{1,0:T(1,128)}', space=vmem, size = 0x12000, scoped, tag = 'internal scratch']
  %s0 = inlined_call_operand.vmem [shape: bf16[16,96], index: 0, kind: input, shape index: {}]
  %s1 = inlined_call_operand.vmem [shape: f32[2,1,8], index: 1, kind: input, shape index: {}]
  %s2 = inlined_call_operand.vmem [shape: bf16[16,32], index: 2, kind: output, shape index: {}]
  %s3 = sld [smem:[#allocation0]]
  $region41: #{bert_forward.15} parent=0
    _
  %s5 = ssub.s32 1, %s3
  %s6 = scalar_select 0, %s5, %s3
  loop: start=0, step=1, limit=4
  $region2: #{bert_forward.15} parent=0 // loop_pre_header
    _
  $region3: #{bert_forward.15} parent=0 // loop_header
    %s8 = sphi 0, %s12
    %p9 = scmp.ge.s32.totalorder %s8, 4
    %s18 = sphi 0, %s20
    %s21 = sphi 0, %s18
    %s22 = sphi 0, %s21
    %s38 = sphi 0, %s22
    %s44 = sphi 0, %s46
    %s47 = sphi 0, %s44
    %s48 = sphi 0, %s47
    %s64 = sphi 0, %s48
    %s70 = sphi 0, %s72
    %s73 = sphi 0, %s70
    %s74 = sphi 0, %s73
    %s90 = sphi 0, %s74
  $region4: #{bert_forward.15} parent=0 // loop_header_branch
    %11 = sbr.rel (%p9) target = $region8
  $region5: #{bert_forward.15} parent=0 // loop_body
    %s13 = ssub.s32 %s8, 1
    %s14 = ssub.s32 %s8, 2
    %s15 = sadd.s32 %s8, 1
    %s16 = ssub.s32 %s8, %s15
    %p17 = scmp.eq.s32.totalorder %s16, 0
    %s19 = sadd.s32 %s18, 1
    %s20 = scalar_select %p17, %s18, %s19
    %p23 = pneg %p17
    %p24 = scmp.eq.s32.totalorder %s8, 1
    %p25 = por %p23, %p24
    %p26 = scmp.ne.s32.totalorder %s18, %s21
    %p27 = scmp.eq.s32.totalorder %s8, 0
    %p28 = por %p26, %p27
    %p29 = scmp.ne.s32.totalorder %s18, %s21
    %p30 = scmp.eq.s32.totalorder %s13, 1
    %p31 = por %p29, %p30
    %p32 = scmp.ne.s32.totalorder %s21, %s22
    %p33 = scmp.eq.s32.totalorder %s13, 0
    %p34 = por %p32, %p33
    %p35 = scmp.ne.s32.totalorder %s21, %s22
    %p36 = scmp.eq.s32.totalorder %s14, 1
    %p37 = por %p35, %p36
    %p39 = scmp.ne.s32.totalorder %s22, %s38
    %p40 = scmp.eq.s32.totalorder %s14, 0
    %p41 = por %p39, %p40
    %s42 = ssub.s32 %s8, %s15
    %p43 = scmp.eq.s32.totalorder %s42, 0
    %s45 = sadd.s32 %s44, 1
    %s46 = scalar_select %p43, %s44, %s45
    %p49 = pneg %p43
    %p50 = scmp.eq.s32.totalorder %s8, 1
    %p51 = por %p49, %p50
    %p52 = scmp.ne.s32.totalorder %s44, %s47
    %p53 = scmp.eq.s32.totalorder %s8, 0
    %p54 = por %p52, %p53
    %p55 = scmp.ne.s32.totalorder %s44, %s47
    %p56 = scmp.eq.s32.totalorder %s13, 1
    %p57 = por %p55, %p56
    %p58 = scmp.ne.s32.totalorder %s47, %s48
    %p59 = scmp.eq.s32.totalorder %s13, 0
    %p60 = por %p58, %p59
    %p61 = scmp.ne.s32.totalorder %s47, %s48
    %p62 = scmp.eq.s32.totalorder %s14, 1
    %p63 = por %p61, %p62
    %p65 = scmp.ne.s32.totalorder %s48, %s64
    %p66 = scmp.eq.s32.totalorder %s14, 0
    %p67 = por %p65, %p66
    %s68 = ssub.s32 %s8, %s15
    %p69 = scmp.eq.s32.totalorder %s68, 0
    %s71 = sadd.s32 %s70, 1
    %s72 = scalar_select %p69, %s70, %s71
    %p75 = pneg %p69
    %p76 = scmp.eq.s32.totalorder %s8, 1
    %p77 = por %p75, %p76
    %p78 = scmp.ne.s32.totalorder %s70, %s73
    %p79 = scmp.eq.s32.totalorder %s8, 0
    %p80 = por %p78, %p79
    %p81 = scmp.ne.s32.totalorder %s70, %s73
    %p82 = scmp.eq.s32.totalorder %s13, 1
    %p83 = por %p81, %p82
    %p84 = scmp.ne.s32.totalorder %s73, %s74
    %p85 = scmp.eq.s32.totalorder %s13, 0
    %p86 = por %p84, %p85
    %p87 = scmp.ne.s32.totalorder %s73, %s74
    %p88 = scmp.eq.s32.totalorder %s14, 1
    %p89 = por %p87, %p88
    %p91 = scmp.ne.s32.totalorder %s74, %s90
    %p92 = scmp.eq.s32.totalorder %s14, 0
    %p93 = por %p91, %p92
    %p94 = scmp.le.s32.totalorder 1, %s8
    %p95 = scmp.lt.s32.totalorder %s8, 3
    %p96 = pnand %p94, %p95
    %p97 = pneg %p96
    // Predicated region
    $region9: #{bert_forward.15} parent=5 // pred_check
      _
    $region10: #{bert_forward.15} parent=5 // pred_check_branch
      %99 = sbr.rel (%p96) target = $region12
    $region11: #{bert_forward.15} parent=5 // pred_region
      %s100 = ssub.s32 %s8, 1
    $region12: #{bert_forward.15} parent=5 // pred_fallthru
      _
    %p101 = scmp.lt.s32.totalorder %s8, 2
    // Predicated region
    $region13: #{bert_forward.15} parent=5 // pred_check
      %p102 = pneg %p101
    $region14: #{bert_forward.15} parent=5 // pred_check_branch
      %104 = sbr.rel (%p102) target = $region16
    $region15: #{bert_forward.15} parent=5 // pred_region
      // Predicated region
      $region17: #{bert_forward.15} parent=15 // pred_check
        %p105 = pneg %p28
      $region18: #{bert_forward.15} parent=15 // pred_check_branch
        %107 = sbr.rel (%p105) target = $region20
      $region19: #{bert_forward.15} parent=15 // pred_region
        %p108 = scmp.lt.s32.totalorder %s8, 1
        %s109 = scalar_select %p108, %s8, 1
        %s110 = smul.addr %s109, 4
        %s111 = scalar_lea.vmem %s0, %s110
      $region20: #{bert_forward.15} parent=15 // pred_fallthru
        _
      // Predicated region
      $region21: #{bert_forward.15} parent=15 // pred_check
        %p112 = pneg %p54
      $region22: #{bert_forward.15} parent=15 // pred_check_branch
        %114 = sbr.rel (%p112) target = $region24
      $region23: #{bert_forward.15} parent=15 // pred_region
        %p115 = scmp.lt.s32.totalorder %s8, 1
        %s116 = scalar_select %p115, %s8, 1
        %s117 = scalar_lea.vmem %s1, %s116
      $region24: #{bert_forward.15} parent=15 // pred_fallthru
        _
    $region16: #{bert_forward.15} parent=5 // pred_fallthru
      _
    %p118 = scmp.le.s32.totalorder 1, %s8
    %p119 = scmp.lt.s32.totalorder %s8, 3
    %p120 = pnand %p118, %p119
    %p121 = pneg %p120
    // Predicated region
    $region25: #{bert_forward.15} parent=5 // pred_check
      _
    $region26: #{bert_forward.15} parent=5 // pred_check_branch
      %123 = sbr.rel (%p120) target = $region28
    $region27: #{bert_forward.15} parent=5 // pred_region
      %s124 = ssub.s32 %s8, 1
      %p125 = scmp.lt.s32.totalorder %s13, 1
      %s126 = scalar_select %p125, %s13, 1
      %s127 = smul.addr %s126, 4
      %s128 = scalar_lea.vmem %s0, %s127
      %p129 = pneg %p34
      %p130 = pneg %p31
      %p131 = scmp.lt.s32.totalorder %s13, 1
      %s132 = scalar_select %p131, %s13, 1
      %s133 = scalar_lea.vmem %s1, %s132
      %p134 = pneg %p60
      %p135 = pneg %p57
      %p136 = pneg %p86
      %p137 = pneg %p83
      %p138 = scmp.lt.s32.totalorder %s13, 1
      %s139 = scalar_select %p138, %s13, 1
      %s140 = smul.addr %s139, 4
      %s141 = scalar_lea.vmem %s2, %s140
      %p142 = scmp.lt.s32.totalorder %s13, 1
      %s143 = scalar_select %p142, %s13, 1
      %s144 = smul.addr %s143, 4
      %s145 = scalar_lea.vmem %s0, %s144
      %p146 = scmp.lt.s32.totalorder %s13, 1
      %s147 = scalar_select %p146, %s13, 1
      %s148 = scalar_lea.vmem %s1, %s147
      %p149 = scmp.lt.s32.totalorder %s13, 1
      %s150 = scalar_select %p149, %s13, 1
      %s151 = smul.addr %s150, 4
      %s152 = scalar_lea.vmem %s2, %s151
      %v154 = vld [vmem:[%s148] sm:$0x1]
      %v155 = vld [vmem:[%s145] sm:$0xf]
      %v157 = vlaneseq
      %v158 = vshrl.u32 %v157, 7
      %v159 = vsub.s32 0, %v158
      %v160 = vrot.slane %v154, %v159
      %v163 = vunpack.c.l.b16 %v155
      %v164 = vpack.c.b16 %v163, %v163
      %165 = vrot.lane.b32.xlu0 %v164, 96
      %v166 = vpop.permute.xlu0 %165
      %vm167 = vcmask 64512
      %v169 = vsel %vm167, %v155, 0
      %v172 = vsel %vm167, %v166, 0
      %174 = vmatprep.subr.bf16.mxu0 0
      %175 = vmatpush1.bf16.xpose.msra.mxu0 %v172
      %176 = vmatprep.subr.bf16.mxu0 0
      %177 = vmatpush1.bf16.xpose.msra.mxu0 0
      %178 = vmatprep.subr.bf16.mxu0 0
      %179 = vmatpush1.bf16.xpose.msra.mxu0 0
      %180 = vmatprep.subr.bf16.mxu0 0
      %181 = vmatpush1.bf16.xpose.msra.mxu0 0
      %182 = vmatprep.subr.bf16.mxu0 0
      %183 = vmatpush1.bf16.xpose.msra.mxu0 0
      %184 = vmatprep.subr.bf16.mxu0 0
      %185 = vmatpush1.bf16.xpose.msra.mxu0 0
      %186 = vmatprep.subr.bf16.mxu0 0
      %187 = vmatpush1.bf16.xpose.msra.mxu0 0
      %188 = vmatprep.subr.bf16.mxu0 0
      %189 = vmatpush1.bf16.xpose.msra.mxu0 0
      %190 = vmatprep.subr.bf16.mxu0 0
      %191 = vmatpush1.bf16.xpose.msra.mxu0 0
      %192 = vmatprep.subr.bf16.mxu0 0
      %193 = vmatpush1.bf16.xpose.msra.mxu0 0
      %194 = vmatprep.subr.bf16.mxu0 0
      %195 = vmatpush1.bf16.xpose.msra.mxu0 0
      %196 = vmatprep.subr.bf16.mxu0 0
      %197 = vmatpush1.bf16.xpose.msra.mxu0 0
      %198 = vmatprep.subr.bf16.mxu0 0
      %199 = vmatpush1.bf16.xpose.msra.mxu0 0
      %200 = vmatprep.subr.bf16.mxu0 0
      %201 = vmatpush1.bf16.xpose.msra.mxu0 0
      %202 = vmatprep.subr.bf16.mxu0 0
      %203 = vmatpush1.bf16.xpose.msra.mxu0 0
      %204 = vmatprep.subr.bf16.mxu0 0
      %205 = vmatpush1.bf16.xpose.msra.mxu0 0
      %206 = vmatprep.mubr.bf16.mxu0 0
      %207 = vmatmul.mubr.bf16.gmra.mrb[0].mxu0 %v169
      %v208 = vpop.f32.mrb[0].mxu0
      %v209 = vadd.f32 %v160, %v208
      %v210 = vpop.f32.mrb[0].mxu0
      %v211 = vpop.f32.mrb[0].mxu0
      %v212 = vpop.f32.mrb[0].mxu0
      %213 = vdwg.mxu0
      %v214 = vsel %vm167, %v209, -inf
      %215 = vmax.xlane.f32.xlu0 %v214
      %v216 = vpop.xlane.xlu0 %215
      %v217 = vsub.f32 %v209, %v216
      %v218 = vmul.f32 %v217, 1.442695
      %v219 = vpow.pop %v218
      %v220 = vsel %vm167, %v219, 0.0
      %221 = vadd.xlane.f32.xlu0 %v220
      %v222 = vpop.xlane.xlu0 %221
      %v223 = vrcp.pop %v222
      %v224 = vmul.f32 %v219, %v223
      %v225 = vpack.c.bf16 %v224, %v224
      %226 = vrot.lane.b32.xlu0 %v164, 64
      %v227 = vpop.permute.xlu0 %226
      %v229 = vsel %vm167, %v225, 0
      %vm231 = vcmask 1043456
      %v233 = vsel %vm231, %v227, 0
      %235 = vmatprep.subr.bf16.mxu0 0
      %236 = vmatpush1.bf16.msra.mxu0 %v233
      %237 = vmatprep.subr.bf16.mxu0 0
      %238 = vmatpush1.bf16.msra.mxu0 0
      %239 = vmatprep.subr.bf16.mxu0 0
      %240 = vmatpush1.bf16.msra.mxu0 0
      %241 = vmatprep.subr.bf16.mxu0 0
      %242 = vmatpush1.bf16.msra.mxu0 0
      %243 = vmatprep.subr.bf16.mxu0 0
      %244 = vmatpush1.bf16.msra.mxu0 0
      %245 = vmatprep.subr.bf16.mxu0 0
      %246 = vmatpush1.bf16.msra.mxu0 0
      %247 = vmatprep.subr.bf16.mxu0 0
      %248 = vmatpush1.bf16.msra.mxu0 0
      %249 = vmatprep.subr.bf16.mxu0 0
      %250 = vmatpush1.bf16.msra.mxu0 0
      %251 = vmatprep.subr.bf16.mxu0 0
      %252 = vmatpush1.bf16.msra.mxu0 0
      %253 = vmatprep.subr.bf16.mxu0 0
      %254 = vmatpush1.bf16.msra.mxu0 0
      %255 = vmatprep.subr.bf16.mxu0 0
      %256 = vmatpush1.bf16.msra.mxu0 0
      %257 = vmatprep.subr.bf16.mxu0 0
      %258 = vmatpush1.bf16.msra.mxu0 0
      %259 = vmatprep.subr.bf16.mxu0 0
      %260 = vmatpush1.bf16.msra.mxu0 0
      %261 = vmatprep.subr.bf16.mxu0 0
      %262 = vmatpush1.bf16.msra.mxu0 0
      %263 = vmatprep.subr.bf16.mxu0 0
      %264 = vmatpush1.bf16.msra.mxu0 0
      %265 = vmatprep.subr.bf16.mxu0 0
      %266 = vmatpush1.bf16.msra.mxu0 0
      %267 = vmatprep.mubr.bf16.mxu0 0
      %268 = vmatmul.mubr.bf16.gmra.mrb[0].mxu0 %v229
      %v269 = vpop.f32.mrb[0].mxu0
      %v270 = vadd.f32 0.0, %v269
      %v271 = vpop.f32.mrb[0].mxu0
      %v272 = vpop.f32.mrb[0].mxu0
      %v273 = vpop.f32.mrb[0].mxu0
      %274 = vdwg.mxu0
      %v275 = vpack.c.bf16 %v270, %v270
      %vm276 = vcmask 60416
      %277 = vst.msk [vmem:[%s152] sm:$0xf] %vm276, %v275
      %v278 = vld [vmem:[%s145] sm:$0xf]
      %v280 = vunpack.c.l.b16 %v278
      %v281 = vpack.c.b16 %v280, %v280
      %282 = vrot.lane.b32.xlu0 %v281, 120
      %v283 = vpop.permute.xlu0 %282
      %284 = vrot.lane.b32.xlu0 %v281, 88
      %v285 = vpop.permute.xlu0 %284
      %v287 = vsel %vm167, %v283, 0
      %v290 = vsel %vm167, %v285, 0
      %292 = vmatprep.subr.bf16.mxu0 0
      %293 = vmatpush1.bf16.xpose.msra.mxu0 %v290
      %294 = vmatprep.subr.bf16.mxu0 0
      %295 = vmatpush1.bf16.xpose.msra.mxu0 0
      %296 = vmatprep.subr.bf16.mxu0 0
      %297 = vmatpush1.bf16.xpose.msra.mxu0 0
      %298 = vmatprep.subr.bf16.mxu0 0
      %299 = vmatpush1.bf16.xpose.msra.mxu0 0
      %300 = vmatprep.subr.bf16.mxu0 0
      %301 = vmatpush1.bf16.xpose.msra.mxu0 0
      %302 = vmatprep.subr.bf16.mxu0 0
      %303 = vmatpush1.bf16.xpose.msra.mxu0 0
      %304 = vmatprep.subr.bf16.mxu0 0
      %305 = vmatpush1.bf16.xpose.msra.mxu0 0
      %306 = vmatprep.subr.bf16.mxu0 0
      %307 = vmatpush1.bf16.xpose.msra.mxu0 0
      %308 = vmatprep.subr.bf16.mxu0 0
      %309 = vmatpush1.bf16.xpose.msra.mxu0 0
      %310 = vmatprep.subr.bf16.mxu0 0
      %311 = vmatpush1.bf16.xpose.msra.mxu0 0
      %312 = vmatprep.subr.bf16.mxu0 0
      %313 = vmatpush1.bf16.xpose.msra.mxu0 0
      %314 = vmatprep.subr.bf16.mxu0 0
      %315 = vmatpush1.bf16.xpose.msra.mxu0 0
      %316 = vmatprep.subr.bf16.mxu0 0
      %317 = vmatpush1.bf16.xpose.msra.mxu0 0
      %318 = vmatprep.subr.bf16.mxu0 0
      %319 = vmatpush1.bf16.xpose.msra.mxu0 0
      %320 = vmatprep.subr.bf16.mxu0 0
      %321 = vmatpush1.bf16.xpose.msra.mxu0 0
      %322 = vmatprep.subr.bf16.mxu0 0
      %323 = vmatpush1.bf16.xpose.msra.mxu0 0
      %324 = vmatprep.mubr.bf16.mxu0 0
      %325 = vmatmul.mubr.bf16.gmra.mrb[0].mxu0 %v287
      %v326 = vpop.f32.mrb[0].mxu0
      %v327 = vadd.f32 %v160, %v326
      %v328 = vpop.f32.mrb[0].mxu0
      %v329 = vpop.f32.mrb[0].mxu0
      %v330 = vpop.f32.mrb[0].mxu0
      %331 = vdwg.mxu0
      %v332 = vsel %vm167, %v327, -inf
      %333 = vmax.xlane.f32.xlu0 %v332
      %v334 = vpop.xlane.xlu0 %333
      %v335 = vsub.f32 %v327, %v334
      %v336 = vmul.f32 %v335, 1.442695
      %v337 = vpow.pop %v336
      %v338 = vsel %vm167, %v337, 0.0
      %339 = vadd.xlane.f32.xlu0 %v338
      %v340 = vpop.xlane.xlu0 %339
      %v341 = vrcp.pop %v340
      %v342 = vmul.f32 %v337, %v341
      %v343 = vpack.c.bf16 %v342, %v342
      %344 = vrot.lane.b32.xlu0 %v281, 56
      %v345 = vpop.permute.xlu0 %344
      %v347 = vsel %vm167, %v343, 0
      %v350 = vsel %vm231, %v345, 0
      %352 = vmatprep.subr.bf16.mxu0 0
      %353 = vmatpush1.bf16.msra.mxu0 %v350
      %354 = vmatprep.subr.bf16.mxu0 0
      %355 = vmatpush1.bf16.msra.mxu0 0
      %356 = vmatprep.subr.bf16.mxu0 0
      %357 = vmatpush1.bf16.msra.mxu0 0
      %358 = vmatprep.subr.bf16.mxu0 0
      %359 = vmatpush1.bf16.msra.mxu0 0
      %360 = vmatprep.subr.bf16.mxu0 0
      %361 = vmatpush1.bf16.msra.mxu0 0
      %362 = vmatprep.subr.bf16.mxu0 0
      %363 = vmatpush1.bf16.msra.mxu0 0
      %364 = vmatprep.subr.bf16.mxu0 0
      %365 = vmatpush1.bf16.msra.mxu0 0
      %366 = vmatprep.subr.bf16.mxu0 0
      %367 = vmatpush1.bf16.msra.mxu0 0
      %368 = vmatprep.subr.bf16.mxu0 0
      %369 = vmatpush1.bf16.msra.mxu0 0
      %370 = vmatprep.subr.bf16.mxu0 0
      %371 = vmatpush1.bf16.msra.mxu0 0
      %372 = vmatprep.subr.bf16.mxu0 0
      %373 = vmatpush1.bf16.msra.mxu0 0
      %374 = vmatprep.subr.bf16.mxu0 0
      %375 = vmatpush1.bf16.msra.mxu0 0
      %376 = vmatprep.subr.bf16.mxu0 0
      %377 = vmatpush1.bf16.msra.mxu0 0
      %378 = vmatprep.subr.bf16.mxu0 0
      %379 = vmatpush1.bf16.msra.mxu0 0
      %380 = vmatprep.subr.bf16.mxu0 0
      %381 = vmatpush1.bf16.msra.mxu0 0
      %382 = vmatprep.subr.bf16.mxu0 0
      %383 = vmatpush1.bf16.msra.mxu0 0
      %384 = vmatprep.mubr.bf16.mxu0 0
      %385 = vmatmul.mubr.bf16.gmra.mrb[0].mxu0 %v347
      %v386 = vpop.f32.mrb[0].mxu0
      %v387 = vadd.f32 0.0, %v386
      %v388 = vpop.f32.mrb[0].mxu0
      %v389 = vpop.f32.mrb[0].mxu0
      %v390 = vpop.f32.mrb[0].mxu0
      %391 = vdwg.mxu0
      %v392 = vpack.c.bf16 %v387, %v387
      %v394 = vunpack.c.l.b16 %v392
      %v395 = vpack.c.b16 %v394, %v394
      %396 = vrot.lane.b32.xlu0 %v395, 8
      %v397 = vpop.permute.xlu0 %396
      %vm399 = vcmask 126016
      %400 = vst.msk [vmem:[%s152] sm:$0xf] %vm399, %v397
      %v401 = vld [vmem:[%s145] sm:$0xf]
      %v403 = vunpack.c.l.b16 %v401
      %v404 = vpack.c.b16 %v403, %v403
      %405 = vrot.lane.b32.xlu0 %v404, 112
      %v406 = vpop.permute.xlu0 %405
      %407 = vrot.lane.b32.xlu0 %v404, 80
      %v408 = vpop.permute.xlu0 %407
      %v410 = vsel %vm167, %v406, 0
      %v413 = vsel %vm167, %v408, 0
      %415 = vmatprep.subr.bf16.mxu0 0
      %416 = vmatpush1.bf16.xpose.msra.mxu0 %v413
      %417 = vmatprep.subr.bf16.mxu0 0
      %418 = vmatpush1.bf16.xpose.msra.mxu0 0
      %419 = vmatprep.subr.bf16.mxu0 0
      %420 = vmatpush1.bf16.xpose.msra.mxu0 0
      %421 = vmatprep.subr.bf16.mxu0 0
      %422 = vmatpush1.bf16.xpose.msra.mxu0 0
      %423 = vmatprep.subr.bf16.mxu0 0
      %424 = vmatpush1.bf16.xpose.msra.mxu0 0
      %425 = vmatprep.subr.bf16.mxu0 0
      %426 = vmatpush1.bf16.xpose.msra.mxu0 0
      %427 = vmatprep.subr.bf16.mxu0 0
      %428 = vmatpush1.bf16.xpose.msra.mxu0 0
      %429 = vmatprep.subr.bf16.mxu0 0
      %430 = vmatpush1.bf16.xpose.msra.mxu0 0
      %431 = vmatprep.subr.bf16.mxu0 0
      %432 = vmatpush1.bf16.xpose.msra.mxu0 0
      %433 = vmatprep.subr.bf16.mxu0 0
      %434 = vmatpush1.bf16.xpose.msra.mxu0 0
      %435 = vmatprep.subr.bf16.mxu0 0
      %436 = vmatpush1.bf16.xpose.msra.mxu0 0
      %437 = vmatprep.subr.bf16.mxu0 0
      %438 = vmatpush1.bf16.xpose.msra.mxu0 0
      %439 = vmatprep.subr.bf16.mxu0 0
      %440 = vmatpush1.bf16.xpose.msra.mxu0 0
      %441 = vmatprep.subr.bf16.mxu0 0
      %442 = vmatpush1.bf16.xpose.msra.mxu0 0
      %443 = vmatprep.subr.bf16.mxu0 0
      %444 = vmatpush1.bf16.xpose.msra.mxu0 0
      %445 = vmatprep.subr.bf16.mxu0 0
      %446 = vmatpush1.bf16.xpose.msra.mxu0 0
      %447 = vmatprep.mubr.bf16.mxu0 0
      %448 = vmatmul.mubr.bf16.gmra.mrb[0].mxu0 %v410
      %v449 = vpop.f32.mrb[0].mxu0
      %v450 = vadd.f32 %v160, %v449
      %v451 = vpop.f32.mrb[0].mxu0
      %v452 = vpop.f32.mrb[0].mxu0
      %v453 = vpop.f32.mrb[0].mxu0
      %454 = vdwg.mxu0
      %v455 = vsel %vm167, %v450, -inf
      %456 = vmax.xlane.f32.xlu0 %v455
      %v457 = vpop.xlane.xlu0 %456
      %v458 = vsub.f32 %v450, %v457
      %v459 = vmul.f32 %v458, 1.442695
      %v460 = vpow.pop %v459
      %v461 = vsel %vm167, %v460, 0.0
      %462 = vadd.xlane.f32.xlu0 %v461
      %v463 = vpop.xlane.xlu0 %462
      %v464 = vrcp.pop %v463
      %v465 = vmul.f32 %v460, %v464
      %v466 = vpack.c.bf16 %v465, %v465
      %467 = vrot.lane.b32.xlu0 %v404, 48
      %v468 = vpop.permute.xlu0 %467
      %v470 = vsel %vm167, %v466, 0
      %v473 = vsel %vm231, %v468, 0
      %475 = vmatprep.subr.bf16.mxu0 0
      %476 = vmatpush1.bf16.msra.mxu0 %v473
      %477 = vmatprep.subr.bf16.mxu0 0
      %478 = vmatpush1.bf16.msra.mxu0 0
      %479 = vmatprep.subr.bf16.mxu0 0
      %480 = vmatpush1.bf16.msra.mxu0 0
      %481 = vmatprep.subr.bf16.mxu0 0
      %482 = vmatpush1.bf16.msra.mxu0 0
      %483 = vmatprep.subr.bf16.mxu0 0
      %484 = vmatpush1.bf16.msra.mxu0 0
      %485 = vmatprep.subr.bf16.mxu0 0
      %486 = vmatpush1.bf16.msra.mxu0 0
      %487 = vmatprep.subr.bf16.mxu0 0
      %488 = vmatpush1.bf16.msra.mxu0 0
      %489 = vmatprep.subr.bf16.mxu0 0
      %490 = vmatpush1.bf16.msra.mxu0 0
      %491 = vmatprep.subr.bf16.mxu0 0
      %492 = vmatpush1.bf16.msra.mxu0 0
      %493 = vmatprep.subr.bf16.mxu0 0
      %494 = vmatpush1.bf16.msra.mxu0 0
      %495 = vmatprep.subr.bf16.mxu0 0
      %496 = vmatpush1.bf16.msra.mxu0 0
      %497 = vmatprep.subr.bf16.mxu0 0
      %498 = vmatpush1.bf16.msra.mxu0 0
      %499 = vmatprep.subr.bf16.mxu0 0
      %500 = vmatpush1.bf16.msra.mxu0 0
      %501 = vmatprep.subr.bf16.mxu0 0
      %502 = vmatpush1.bf16.msra.mxu0 0
      %503 = vmatprep.subr.bf16.mxu0 0
      %504 = vmatpush1.bf16.msra.mxu0 0
      %505 = vmatprep.subr.bf16.mxu0 0
      %506 = vmatpush1.bf16.msra.mxu0 0
      %507 = vmatprep.mubr.bf16.mxu0 0
      %508 = vmatmul.mubr.bf16.gmra.mrb[0].mxu0 %v470
      %v509 = vpop.f32.mrb[0].mxu0
      %v510 = vadd.f32 0.0, %v509
      %v511 = vpop.f32.mrb[0].mxu0
      %v512 = vpop.f32.mrb[0].mxu0
      %v513 = vpop.f32.mrb[0].mxu0
      %514 = vdwg.mxu0
      %v515 = vpack.c.bf16 %v510, %v510
      %v517 = vunpack.c.l.b16 %v515
      %v518 = vpack.c.b16 %v517, %v517
      %519 = vrot.lane.b32.xlu0 %v518, 16
      %v520 = vpop.permute.xlu0 %519
      %vm522 = vcmask 191616
      %523 = vst.msk [vmem:[%s152] sm:$0xf] %vm522, %v520
      %v524 = vld [vmem:[%s145] sm:$0xf]
      %v526 = vunpack.c.l.b16 %v524
      %v527 = vpack.c.b16 %v526, %v526
      %528 = vrot.lane.b32.xlu0 %v527, 104
      %v529 = vpop.permute.xlu0 %528
      %530 = vrot.lane.b32.xlu0 %v527, 72
      %v531 = vpop.permute.xlu0 %530
      %v533 = vsel %vm167, %v529, 0
      %v536 = vsel %vm167, %v531, 0
      %538 = vmatprep.subr.bf16.mxu0 0
      %539 = vmatpush1.bf16.xpose.msra.mxu0 %v536
      %540 = vmatprep.subr.bf16.mxu0 0
      %541 = vmatpush1.bf16.xpose.msra.mxu0 0
      %542 = vmatprep.subr.bf16.mxu0 0
      %543 = vmatpush1.bf16.xpose.msra.mxu0 0
      %544 = vmatprep.subr.bf16.mxu0 0
      %545 = vmatpush1.bf16.xpose.msra.mxu0 0
      %546 = vmatprep.subr.bf16.mxu0 0
      %547 = vmatpush1.bf16.xpose.msra.mxu0 0
      %548 = vmatprep.subr.bf16.mxu0 0
      %549 = vmatpush1.bf16.xpose.msra.mxu0 0
      %550 = vmatprep.subr.bf16.mxu0 0
      %551 = vmatpush1.bf16.xpose.msra.mxu0 0
      %552 = vmatprep.subr.bf16.mxu0 0
      %553 = vmatpush1.bf16.xpose.msra.mxu0 0
      %554 = vmatprep.subr.bf16.mxu0 0
      %555 = vmatpush1.bf16.xpose.msra.mxu0 0
      %556 = vmatprep.subr.bf16.mxu0 0
      %557 = vmatpush1.bf16.xpose.msra.mxu0 0
      %558 = vmatprep.subr.bf16.mxu0 0
      %559 = vmatpush1.bf16.xpose.msra.mxu0 0
      %560 = vmatprep.subr.bf16.mxu0 0
      %561 = vmatpush1.bf16.xpose.msra.mxu0 0
      %562 = vmatprep.subr.bf16.mxu0 0
      %563 = vmatpush1.bf16.xpose.msra.mxu0 0
      %564 = vmatprep.subr.bf16.mxu0 0
      %565 = vmatpush1.bf16.xpose.msra.mxu0 0
      %566 = vmatprep.subr.bf16.mxu0 0
      %567 = vmatpush1.bf16.xpose.msra.mxu0 0
      %568 = vmatprep.subr.bf16.mxu0 0
      %569 = vmatpush1.bf16.xpose.msra.mxu0 0
      %570 = vmatprep.mubr.bf16.mxu0 0
      %571 = vmatmul.mubr.bf16.gmra.mrb[0].mxu0 %v533
      %v572 = vpop.f32.mrb[0].mxu0
      %v573 = vadd.f32 %v160, %v572
      %v574 = vpop.f32.mrb[0].mxu0
      %v575 = vpop.f32.mrb[0].mxu0
      %v576 = vpop.f32.mrb[0].mxu0
      %577 = vdwg.mxu0
      %v578 = vsel %vm167, %v573, -inf
      %579 = vmax.xlane.f32.xlu0 %v578
      %v580 = vpop.xlane.xlu0 %579
      %v581 = vsub.f32 %v573, %v580
      %v582 = vmul.f32 %v581, 1.442695
      %v583 = vpow.pop %v582
      %v584 = vsel %vm167, %v583, 0.0
      %585 = vadd.xlane.f32.xlu0 %v584
      %v586 = vpop.xlane.xlu0 %585
      %v587 = vrcp.pop %v586
      %v588 = vmul.f32 %v583, %v587
      %v589 = vpack.c.bf16 %v588, %v588
      %590 = vrot.lane.b32.xlu0 %v527, 40
      %v591 = vpop.permute.xlu0 %590
      %v593 = vsel %vm167, %v589, 0
      %v596 = vsel %vm231, %v591, 0
      %598 = vmatprep.subr.bf16.mxu0 0
      %599 = vmatpush1.bf16.msra.mxu0 %v596
      %600 = vmatprep.subr.bf16.mxu0 0
      %601 = vmatpush1.bf16.msra.mxu0 0
      %602 = vmatprep.subr.bf16.mxu0 0
      %603 = vmatpush1.bf16.msra.mxu0 0
      %604 = vmatprep.subr.bf16.mxu0 0
      %605 = vmatpush1.bf16.msra.mxu0 0
      %606 = vmatprep.subr.bf16.mxu0 0
      %607 = vmatpush1.bf16.msra.mxu0 0
      %608 = vmatprep.subr.bf16.mxu0 0
      %609 = vmatpush1.bf16.msra.mxu0 0
      %610 = vmatprep.subr.bf16.mxu0 0
      %611 = vmatpush1.bf16.msra.mxu0 0
      %612 = vmatprep.subr.bf16.mxu0 0
      %613 = vmatpush1.bf16.msra.mxu0 0
      %614 = vmatprep.subr.bf16.mxu0 0
      %615 = vmatpush1.bf16.msra.mxu0 0
      %616 = vmatprep.subr.bf16.mxu0 0
      %617 = vmatpush1.bf16.msra.mxu0 0
      %618 = vmatprep.subr.bf16.mxu0 0
      %619 = vmatpush1.bf16.msra.mxu0 0
      %620 = vmatprep.subr.bf16.mxu0 0
      %621 = vmatpush1.bf16.msra.mxu0 0
      %622 = vmatprep.subr.bf16.mxu0 0
      %623 = vmatpush1.bf16.msra.mxu0 0
      %624 = vmatprep.subr.bf16.mxu0 0
      %625 = vmatpush1.bf16.msra.mxu0 0
      %626 = vmatprep.subr.bf16.mxu0 0
      %627 = vmatpush1.bf16.msra.mxu0 0
      %628 = vmatprep.subr.bf16.mxu0 0
      %629 = vmatpush1.bf16.msra.mxu0 0
      %630 = vmatprep.mubr.bf16.mxu0 0
      %631 = vmatmul.mubr.bf16.gmra.mrb[0].mxu0 %v593
      %v632 = vpop.f32.mrb[0].mxu0
      %v633 = vadd.f32 0.0, %v632
      %v634 = vpop.f32.mrb[0].mxu0
      %v635 = vpop.f32.mrb[0].mxu0
      %v636 = vpop.f32.mrb[0].mxu0
      %637 = vdwg.mxu0
      %v638 = vpack.c.bf16 %v633, %v633
      %v640 = vunpack.c.l.b16 %v638
      %v641 = vpack.c.b16 %v640, %v640
      %642 = vrot.lane.b32.xlu0 %v641, 24
      %v643 = vpop.permute.xlu0 %642
      %vm645 = vcmask 257216
      %646 = vst.msk [vmem:[%s152] sm:$0xf] %vm645, %v643
      %p647 = scmp.lt.s32.totalorder %s13, 1
      %s648 = scalar_select %p647, %s13, 1
      %s649 = smul.addr %s648, 4
      %s650 = scalar_lea.vmem %s2, %s649
      // Predicated region
      $region29: #{bert_forward.15} parent=27 // pred_check
        %p651 = pneg %p83
      $region30: #{bert_forward.15} parent=27 // pred_check_branch
        %653 = sbr.rel (%p651) target = $region32
      $region31: #{bert_forward.15} parent=27 // pred_region
        _
      $region32: #{bert_forward.15} parent=27 // pred_fallthru
        _
    $region28: #{bert_forward.15} parent=5 // pred_fallthru
      _
    %p654 = scmp.le.s32.totalorder 2, %s8
    // Predicated region
    $region33: #{bert_forward.15} parent=5 // pred_check
      %p655 = pneg %p654
    $region34: #{bert_forward.15} parent=5 // pred_check_branch
      %657 = sbr.rel (%p655) target = $region36
    $region35: #{bert_forward.15} parent=5 // pred_region
      %s658 = ssub.s32 %s8, 2
      // Predicated region
      $region37: #{bert_forward.15} parent=35 // pred_check
        %p659 = pneg %p89
      $region38: #{bert_forward.15} parent=35 // pred_check_branch
        %661 = sbr.rel (%p659) target = $region40
      $region39: #{bert_forward.15} parent=35 // pred_region
        %p662 = scmp.lt.s32.totalorder %s14, 1
        %s663 = scalar_select %p662, %s14, 1
        %s664 = smul.addr %s663, 4
        %s665 = scalar_lea.vmem %s2, %s664
      $region40: #{bert_forward.15} parent=35 // pred_fallthru
        _
    $region36: #{bert_forward.15} parent=5 // pred_fallthru
      _
  $region6: #{bert_forward.15} parent=0 // loop_footer
    %s12 = sadd.s32 1, %s8
  $region7: #{bert_forward.15} parent=0 // loop_footer_branch
    %7 = sbr.rel target = $region3
  $region8: #{bert_forward.15} parent=0 // loop_exit
    _

// kernel: bert_forward.17
$region0: #{bert_forward.17}
  #allocation0 [shape = 'u32[]', space=smem, size = 0x4, offset = 0x4, fixed_abs, tag = 'smem constant byte address 0x4 - core index']
  #allocation1 [shape = 'u32[144,128]{1,0:T(1,128)}', space=vmem, size = 0x12000, scoped, tag = 'internal scratch']
  #allocation2 [shape = 'f32[16,64]{1,0:T(8,128)}', space=vmem, size = 0x2000, scoped, tag = 'scratch operand']
  %s0 = inlined_call_operand.vmem [shape: bf16[16,32], index: 0, kind: input, shape index: {}]
  %s1 = inlined_call_operand.vmem [shape: bf16[32,64], index: 1, kind: input, shape index: {}]
  %s2 = inlined_call_operand.vmem [shape: f32[1,64], index: 2, kind: input, shape index: {}]
  %s3 = inlined_call_operand.vmem [shape: bf16[16,64], index: 3, kind: output, shape index: {}]
  %s4 = sld [smem:[#allocation0]]
  $region30: #{bert_forward.17} parent=0
    _
  %s6 = ssub.s32 1, %s4
  %s7 = scalar_select 0, %s6, %s4
  // Predicated region
  $region2: #{bert_forward.17} parent=0 // pred_check
    _
  $region3: #{bert_forward.17} parent=0 // pred_check_branch
    %9 = sbr.rel (0) target = $region5
  $region4: #{bert_forward.17} parent=0 // pred_region
    _
  $region5: #{bert_forward.17} parent=0 // pred_fallthru
    _
  // Predicated region
  $region6: #{bert_forward.17} parent=0 // pred_check
    _
  $region7: #{bert_forward.17} parent=0 // pred_check_branch
    %11 = sbr.rel (0) target = $region9
  $region8: #{bert_forward.17} parent=0 // pred_region
    _
  $region9: #{bert_forward.17} parent=0 // pred_fallthru
    _
  // Predicated region
  $region10: #{bert_forward.17} parent=0 // pred_check
    _
  $region11: #{bert_forward.17} parent=0 // pred_check_branch
    %13 = sbr.rel (0) target = $region13
  $region12: #{bert_forward.17} parent=0 // pred_region
    _
  $region13: #{bert_forward.17} parent=0 // pred_fallthru
    _
  %p15 = scmp.eq.s32.totalorder 0, 0
  // Predicated region
  $region14: #{bert_forward.17} parent=0 // pred_check
    %p16 = pneg %p15
  $region15: #{bert_forward.17} parent=0 // pred_check_branch
    %18 = sbr.rel (%p16) target = $region17
  $region16: #{bert_forward.17} parent=0 // pred_region
    %vm19 = vcmask 523264
    %20 = vst.msk [vmem:[#allocation2] sm:$0xff] %vm19, 0.0
    %21 = vst.msk [vmem:[#allocation2 + $0x8] sm:$0xff] %vm19, 0.0
  $region17: #{bert_forward.17} parent=0 // pred_fallthru
    _
  %v22 = vld [vmem:[#allocation2] sm:$0xff]
  %v23 = vld [vmem:[#allocation2 + $0x8] sm:$0xff]
  %v24 = vld [vmem:[%s0] sm:$0xf]
  %v25 = vld [vmem:[%s0 + $0x4] sm:$0xf]
  %v26 = vld [vmem:[%s1] sm:$0xf]
  %v27 = vld [vmem:[%s1 + $0x4] sm:$0xf]
  %v28 = vld [vmem:[%s1 + $0x8] sm:$0xf]
  %v29 = vld [vmem:[%s1 + $0xc] sm:$0xf]
  %v32 = vunpack.c.l.b16 %v24
  %v33 = vunpack.c.l.b16 %v25
  %v34 = vpack.c.b16 %v33, %v32
  %v39 = vunpack.c.l.b16 %v26
  %v40 = vunpack.c.l.b16 %v27
  %v41 = vunpack.c.l.b16 %v28
  %v42 = vunpack.c.l.b16 %v29
  %v43 = vpack.c.b16 %v40, %v39
  %v44 = vpack.c.b16 %v42, %v41
  %vm47 = vcmask 261120
  %v49 = vsel %vm47, %v34, 0
  %51 = vmatprep.subr.bf16.mxu0 0
  %52 = vmatpush1.bf16.msra.mxu0 %v43
  %53 = vmatprep.subr.bf16.mxu0 0
  %54 = vmatpush1.bf16.msra.mxu0 %v44
  %55 = vmatprep.subr.bf16.mxu0 0
  %56 = vmatpush1.bf16.msra.mxu0 0
  %57 = vmatprep.subr.bf16.mxu0 0
  %58 = vmatpush1.bf16.msra.mxu0 0
  %59 = vmatprep.subr.bf16.mxu0 0
  %60 = vmatpush1.bf16.msra.mxu0 0
  %61 = vmatprep.subr.bf16.mxu0 0
  %62 = vmatpush1.bf16.msra.mxu0 0
  %63 = vmatprep.subr.bf16.mxu0 0
  %64 = vmatpush1.bf16.msra.mxu0 0
  %65 = vmatprep.subr.bf16.mxu0 0
  %66 = vmatpush1.bf16.msra.mxu0 0
  %67 = vmatprep.subr.bf16.mxu0 0
  %68 = vmatpush1.bf16.msra.mxu0 0
  %69 = vmatprep.subr.bf16.mxu0 0
  %70 = vmatpush1.bf16.msra.mxu0 0
  %71 = vmatprep.subr.bf16.mxu0 0
  %72 = vmatpush1.bf16.msra.mxu0 0
  %73 = vmatprep.subr.bf16.mxu0 0
  %74 = vmatpush1.bf16.msra.mxu0 0
  %75 = vmatprep.subr.bf16.mxu0 0
  %76 = vmatpush1.bf16.msra.mxu0 0
  %77 = vmatprep.subr.bf16.mxu0 0
  %78 = vmatpush1.bf16.msra.mxu0 0
  %79 = vmatprep.subr.bf16.mxu0 0
  %80 = vmatpush1.bf16.msra.mxu0 0
  %81 = vmatprep.subr.bf16.mxu0 0
  %82 = vmatpush1.bf16.msra.mxu0 0
  %83 = vmatprep.mubr.bf16.mxu0 0
  %84 = vmatmul.mubr.bf16.gmra.mrb[0].mxu0 %v49
  %v85 = vpop.f32.mrb[0].mxu0
  %v86 = vadd.f32 0.0, %v85
  %v87 = vpop.f32.mrb[0].mxu0
  %v88 = vpop.f32.mrb[0].mxu0
  %v89 = vadd.f32 0.0, %v88
  %v90 = vpop.f32.mrb[0].mxu0
  %91 = vdwg.mxu0
  %v92 = vadd.f32 %v22, %v86
  %v93 = vadd.f32 %v23, %v89
  %vm94 = vcmask 523264
  %95 = vst.msk [vmem:[#allocation2] sm:$0xff] %vm94, %v92
  %96 = vst.msk [vmem:[#allocation2 + $0x8] sm:$0xff] %vm94, %v93
  // Predicated region
  $region18: #{bert_forward.17} parent=0 // pred_check
    %p97 = pneg %p15
  $region19: #{bert_forward.17} parent=0 // pred_check_branch
    %99 = sbr.rel (%p97) target = $region21
  $region20: #{bert_forward.17} parent=0 // pred_region
    %v100 = vld [vmem:[#allocation2] sm:$0xff]
    %v101 = vld [vmem:[#allocation2 + $0x8] sm:$0xff]
    %v102 = vld [vmem:[%s2] sm:$0x1]
    %v104 = vlaneseq
    %v105 = vshrl.u32 %v104, 7
    %v106 = vsub.s32 0, %v105
    %v107 = vrot.slane %v102, %v106
    %v109 = vadd.f32 %v100, %v107
    %v110 = vadd.f32 %v101, %v107
    %v111 = vmul.f32 %v109, 0.5
    %v112 = vmul.f32 %v110, 0.5
    %v113 = vmul.f32 %v109, 0.044715
    %v114 = vmul.f32 %v110, 0.044715
    %v115 = vmul.f32 %v113, %v109
    %v116 = vmul.f32 %v114, %v110
    %v117 = vmul.f32 %v115, %v109
    %v118 = vmul.f32 %v116, %v110
    %v119 = vadd.f32 %v109, %v117
    %v120 = vadd.f32 %v110, %v118
    %v121 = vmul.f32 %v119, 0.7978846
    %v122 = vmul.f32 %v120, 0.7978846
    %v123 = vtanh.pop %v121
    %v124 = vtanh.pop %v122
    %v125 = vadd.f32 %v123, 1.0
    %v126 = vadd.f32 %v124, 1.0
    %v127 = vmul.f32 %v111, %v125
    %v128 = vmul.f32 %v112, %v126
    %v129 = vpack.c.bf16 %v128, %v127
    %v131 = vunpack.c.l.b16 %v129
    %v132 = vunpack.c.h.b16 %v129
    %v133 = vpack.c.b16 %v131, %v131
    %v134 = vpack.c.b16 %v132, %v132
    %vm137 = vcmask 519168
    %138 = vst.msk [vmem:[%s3] sm:$0xf] %vm137, %v133
    %139 = vst.msk [vmem:[%s3 + $0x4] sm:$0xf] %vm137, %v134
  $region21: #{bert_forward.17} parent=0 // pred_fallthru
    _
  // Predicated region
  $region22: #{bert_forward.17} parent=0 // pred_check
    _
  $region23: #{bert_forward.17} parent=0 // pred_check_branch
    %141 = sbr.rel (0) target = $region25
  $region24: #{bert_forward.17} parent=0 // pred_region
    _
  $region25: #{bert_forward.17} parent=0 // pred_fallthru
    _
  // Predicated region
  $region26: #{bert_forward.17} parent=0 // pred_check
    _
  $region27: #{bert_forward.17} parent=0 // pred_check_branch
    %143 = sbr.rel (0) target = $region29
  $region28: #{bert_forward.17} parent=0 // pred_region
    _
  $region29: #{bert_forward.17} parent=0 // pred_fallthru
    _

// kernel: bert_forward.24
$region0: #{bert_forward.24}
  #allocation0 [shape = 'u32[]', space=smem, size = 0x4, offset = 0x4, fixed_abs, tag = 'smem constant byte address 0x4 - core index']
  #allocation1 [shape = 'u32[144,128]{1,0:T(1,128)}', space=vmem, size = 0x12000, scoped, tag = 'internal scratch']
  #allocation2 [shape = 'f32[2,32]{1,0:T(2,128)}', space=vmem, size = 0x400, scoped, tag = 'scratch operand']
  %s0 = inlined_call_operand.vmem [shape: bf16[2,32], index: 0, kind: input, shape index: {}]
  %s1 = inlined_call_operand.vmem [shape: bf16[32,32], index: 1, kind: input, shape index: {}]
  %s2 = inlined_call_operand.vmem [shape: f32[1,32], index: 2, kind: input, shape index: {}]
  %s3 = inlined_call_operand.vmem [shape: bf16[2,32], index: 3, kind: output, shape index: {}]
  %s4 = sld [smem:[#allocation0]]
  $region30: #{bert_forward.24} parent=0
    _
  %s6 = ssub.s32 1, %s4
  %s7 = scalar_select 0, %s6, %s4
  // Predicated region
  $region2: #{bert_forward.24} parent=0 // pred_check
    _
  $region3: #{bert_forward.24} parent=0 // pred_check_branch
    %9 = sbr.rel (0) target = $region5
  $region4: #{bert_forward.24} parent=0 // pred_region
    _
  $region5: #{bert_forward.24} parent=0 // pred_fallthru
    _
  // Predicated region
  $region6: #{bert_forward.24} parent=0 // pred_check
    _
  $region7: #{bert_forward.24} parent=0 // pred_check_branch
    %11 = sbr.rel (0) target = $region9
  $region8: #{bert_forward.24} parent=0 // pred_region
    _
  $region9: #{bert_forward.24} parent=0 // pred_fallthru
    _
  // Predicated region
  $region10: #{bert_forward.24} parent=0 // pred_check
    _
  $region11: #{bert_forward.24} parent=0 // pred_check_branch
    %13 = sbr.rel (0) target = $region13
  $region12: #{bert_forward.24} parent=0 // pred_region
    _
  $region13: #{bert_forward.24} parent=0 // pred_fallthru
    _
  %p15 = scmp.eq.s32.totalorder 0, 0
  // Predicated region
  $region14: #{bert_forward.24} parent=0 // pred_check
    %p16 = pneg %p15
  $region15: #{bert_forward.24} parent=0 // pred_check_branch
    %18 = sbr.rel (%p16) target = $region17
  $region16: #{bert_forward.24} parent=0 // pred_region
    %vm19 = vcmask 254976
    %20 = vst.msk [vmem:[#allocation2] sm:$0x3] %vm19, 0.0
  $region17: #{bert_forward.24} parent=0 // pred_fallthru
    _
  %v21 = vld [vmem:[#allocation2] sm:$0x3]
  %v22 = vld [vmem:[%s0] sm:$0x1]
  %v23 = vld [vmem:[%s1] sm:$0xf]
  %v24 = vld [vmem:[%s1 + $0x4] sm:$0xf]
  %v25 = vld [vmem:[%s1 + $0x8] sm:$0xf]
  %v26 = vld [vmem:[%s1 + $0xc] sm:$0xf]
  %v31 = vunpack.c.l.b16 %v23
  %v32 = vunpack.c.l.b16 %v24
  %v33 = vunpack.c.l.b16 %v25
  %v34 = vunpack.c.l.b16 %v26
  %v35 = vpack.c.b16 %v32, %v31
  %v36 = vpack.c.b16 %v34, %v33
  %vm39 = vcmask 261120
  %v41 = vsel %vm39, %v22, 0
  %43 = vmatprep.subr.bf16.mxu0 0
  %44 = vmatpush1.bf16.msra.mxu0 %v35
  %45 = vmatprep.subr.bf16.mxu0 0
  %46 = vmatpush1.bf16.msra.mxu0 %v36
  %47 = vmatprep.subr.bf16.mxu0 0
  %48 = vmatpush1.bf16.msra.mxu0 0
  %49 = vmatprep.subr.bf16.mxu0 0
  %50 = vmatpush1.bf16.msra.mxu0 0
  %51 = vmatprep.subr.bf16.mxu0 0
  %52 = vmatpush1.bf16.msra.mxu0 0
  %53 = vmatprep.subr.bf16.mxu0 0
  %54 = vmatpush1.bf16.msra.mxu0 0
  %55 = vmatprep.subr.bf16.mxu0 0
  %56 = vmatpush1.bf16.msra.mxu0 0
  %57 = vmatprep.subr.bf16.mxu0 0
  %58 = vmatpush1.bf16.msra.mxu0 0
  %59 = vmatprep.subr.bf16.mxu0 0
  %60 = vmatpush1.bf16.msra.mxu0 0
  %61 = vmatprep.subr.bf16.mxu0 0
  %62 = vmatpush1.bf16.msra.mxu0 0
  %63 = vmatprep.subr.bf16.mxu0 0
  %64 = vmatpush1.bf16.msra.mxu0 0
  %65 = vmatprep.subr.bf16.mxu0 0
  %66 = vmatpush1.bf16.msra.mxu0 0
  %67 = vmatprep.subr.bf16.mxu0 0
  %68 = vmatpush1.bf16.msra.mxu0 0
  %69 = vmatprep.subr.bf16.mxu0 0
  %70 = vmatpush1.bf16.msra.mxu0 0
  %71 = vmatprep.subr.bf16.mxu0 0
  %72 = vmatpush1.bf16.msra.mxu0 0
  %73 = vmatprep.subr.bf16.mxu0 0
  %74 = vmatpush1.bf16.msra.mxu0 0
  %75 = vmatprep.mubr.bf16.mxu0 0
  %76 = vmatmul.mubr.bf16.gmra.mrb[0].mxu0 %v41
  %v77 = vpop.f32.mrb[0].mxu0
  %v78 = vadd.f32 0.0, %v77
  %v79 = vpop.f32.mrb[0].mxu0
  %v80 = vpop.f32.mrb[0].mxu0
  %v81 = vpop.f32.mrb[0].mxu0
  %82 = vdwg.mxu0
  %v83 = vadd.f32 %v21, %v78
  %vm84 = vcmask 254976
  %85 = vst.msk [vmem:[#allocation2] sm:$0x3] %vm84, %v83
  // Predicated region
  $region18: #{bert_forward.24} parent=0 // pred_check
    %p86 = pneg %p15
  $region19: #{bert_forward.24} parent=0 // pred_check_branch
    %88 = sbr.rel (%p86) target = $region21
  $region20: #{bert_forward.24} parent=0 // pred_region
    %v89 = vld [vmem:[#allocation2] sm:$0x3]
    %v90 = vld [vmem:[%s2] sm:$0x1]
    %v92 = vlaneseq
    %v93 = vshrl.u32 %v92, 7
    %v94 = vsub.s32 0, %v93
    %v95 = vrot.slane %v90, %v94
    %v97 = vadd.f32 %v89, %v95
    %v98 = vtanh.pop %v97
    %v99 = vpack.c.bf16 %v98, %v98
    %vm100 = vcmask 253952
    %101 = vst.msk [vmem:[%s3] sm:$0x1] %vm100, %v99
  $region21: #{bert_forward.24} parent=0 // pred_fallthru
    _
  // Predicated region
  $region22: #{bert_forward.24} parent=0 // pred_check
    _
  $region23: #{bert_forward.24} parent=0 // pred_check_branch
    %103 = sbr.rel (0) target = $region25
  $region24: #{bert_forward.24} parent=0 // pred_region
    _
  $region25: #{bert_forward.24} parent=0 // pred_fallthru
    _
  // Predicated region
  $region26: #{bert_forward.24} parent=0 // pred_check
    _
  $region27: #{bert_forward.24} parent=0 // pred_check_branch
    %105 = sbr.rel (0) target = $region29
  $region28: #{bert_forward.24} parent=0 // pred_region
    _
  $region29: #{bert_forward.24} parent=0 // pred_fallthru
    _

// kernel: bert_forward.18
$region0: #{bert_forward.18}
  #allocation0 [shape = 'u32[]', space=smem, size = 0x4, offset = 0x4, fixed_abs, tag = 'smem constant byte address 0x4 - core index']
  #allocation1 [shape = 'u32[144,128]{1,0:T(1,128)}', space=vmem, size = 0x12000, scoped, tag = 'internal scratch']
  #allocation2 [shape = 'f32[16,32]{1,0:T(8,128)}', space=vmem, size = 0x2000, scoped, tag = 'scratch operand']
  %s0 = inlined_call_operand.vmem [shape: bf16[16,64], index: 0, kind: input, shape index: {}]
  %s1 = inlined_call_operand.vmem [shape: bf16[64,32], index: 1, kind: input, shape index: {}]
  %s2 = inlined_call_operand.vmem [shape: f32[1,32], index: 2, kind: input, shape index: {}]
  %s3 = inlined_call_operand.vmem [shape: bf16[16,32], index: 3, kind: input, shape index: {}]
  %s4 = inlined_call_operand.vmem [shape: f32[1,32], index: 4, kind: input, shape index: {}]
  %s5 = inlined_call_operand.vmem [shape: f32[1,32], index: 5, kind: input, shape index: {}]
  %s6 = inlined_call_operand.vmem [shape: bf16[16,32], index: 6, kind: output, shape index: {}]
  %s7 = sld [smem:[#allocation0]]
  $region42: #{bert_forward.18} parent=0
    _
  %s9 = ssub.s32 1, %s7
  %s10 = scalar_select 0, %s9, %s7
  // Predicated region
  $region2: #{bert_forward.18} parent=0 // pred_check
    _
  $region3: #{bert_forward.18} parent=0 // pred_check_branch
    %12 = sbr.rel (0) target = $region5
  $region4: #{bert_forward.18} parent=0 // pred_region
    _
  $region5: #{bert_forward.18} parent=0 // pred_fallthru
    _
  // Predicated region
  $region6: #{bert_forward.18} parent=0 // pred_check
    _
  $region7: #{bert_forward.18} parent=0 // pred_check_branch
    %14 = sbr.rel (0) target = $region9
  $region8: #{bert_forward.18} parent=0 // pred_region
    _
  $region9: #{bert_forward.18} parent=0 // pred_fallthru
    _
  // Predicated region
  $region10: #{bert_forward.18} parent=0 // pred_check
    _
  $region11: #{bert_forward.18} parent=0 // pred_check_branch
    %16 = sbr.rel (0) target = $region13
  $region12: #{bert_forward.18} parent=0 // pred_region
    _
  $region13: #{bert_forward.18} parent=0 // pred_fallthru
    _
  // Predicated region
  $region14: #{bert_forward.18} parent=0 // pred_check
    _
  $region15: #{bert_forward.18} parent=0 // pred_check_branch
    %18 = sbr.rel (0) target = $region17
  $region16: #{bert_forward.18} parent=0 // pred_region
    _
  $region17: #{bert_forward.18} parent=0 // pred_fallthru
    _
  // Predicated region
  $region18: #{bert_forward.18} parent=0 // pred_check
    _
  $region19: #{bert_forward.18} parent=0 // pred_check_branch
    %20 = sbr.rel (0) target = $region21
  $region20: #{bert_forward.18} parent=0 // pred_region
    _
  $region21: #{bert_forward.18} parent=0 // pred_fallthru
    _
  // Predicated region
  $region22: #{bert_forward.18} parent=0 // pred_check
    _
  $region23: #{bert_forward.18} parent=0 // pred_check_branch
    %22 = sbr.rel (0) target = $region25
  $region24: #{bert_forward.18} parent=0 // pred_region
    _
  $region25: #{bert_forward.18} parent=0 // pred_fallthru
    _
  %p24 = scmp.eq.s32.totalorder 0, 0
  // Predicated region
  $region26: #{bert_forward.18} parent=0 // pred_check
    %p25 = pneg %p24
  $region27: #{bert_forward.18} parent=0 // pred_check_branch
    %27 = sbr.rel (%p25) target = $region29
  $region28: #{bert_forward.18} parent=0 // pred_region
    %vm28 = vcmask 261120
    %29 = vst.msk [vmem:[#allocation2] sm:$0xff] %vm28, 0.0
    %30 = vst.msk [vmem:[#allocation2 + $0x8] sm:$0xff] %vm28, 0.0
  $region29: #{bert_forward.18} parent=0 // pred_fallthru
    _
  %v31 = vld [vmem:[#allocation2] sm:$0xff]
  %v32 = vld [vmem:[#allocation2 + $0x8] sm:$0xff]
  %v33 = vld [vmem:[%s0] sm:$0xf]
  %v34 = vld [vmem:[%s0 + $0x4] sm:$0xf]
  %v35 = vld [vmem:[%s1] sm:$0xf]
  %v36 = vld [vmem:[%s1 + $0x4] sm:$0xf]
  %v37 = vld [vmem:[%s1 + $0x8] sm:$0xf]
  %v38 = vld [vmem:[%s1 + $0xc] sm:$0xf]
  %v39 = vld [vmem:[%s1 + $0x10] sm:$0xf]
  %v40 = vld [vmem:[%s1 + $0x14] sm:$0xf]
  %v41 = vld [vmem:[%s1 + $0x18] sm:$0xf]
  %v42 = vld [vmem:[%s1 + $0x1c] sm:$0xf]
  %v45 = vunpack.c.l.b16 %v33
  %v46 = vunpack.c.l.b16 %v34
  %v47 = vpack.c.b16 %v46, %v45
  %v56 = vunpack.c.l.b16 %v35
  %v57 = vunpack.c.l.b16 %v36
  %v58 = vunpack.c.l.b16 %v37
  %v59 = vunpack.c.l.b16 %v38
  %v60 = vunpack.c.l.b16 %v39
  %v61 = vunpack.c.l.b16 %v40
  %v62 = vunpack.c.l.b16 %v41
  %v63 = vunpack.c.l.b16 %v42
  %v64 = vpack.c.b16 %v57, %v56
  %v65 = vpack.c.b16 %v59, %v58
  %v66 = vpack.c.b16 %v61, %v60
  %v67 = vpack.c.b16 %v63, %v62
  %vm72 = vcmask 523264
  %v74 = vsel %vm72, %v47, 0
  %76 = vmatprep.subr.bf16.mxu0 0
  %77 = vmatpush1.bf16.msra.mxu0 %v64
  %78 = vmatprep.subr.bf16.mxu0 0
  %79 = vmatpush1.bf16.msra.mxu0 %v65
  %80 = vmatprep.subr.bf16.mxu0 0
  %81 = vmatpush1.bf16.msra.mxu0 %v66
  %82 = vmatprep.subr.bf16.mxu0 0
  %83 = vmatpush1.bf16.msra.mxu0 %v67
  %84 = vmatprep.subr.bf16.mxu0 0
  %85 = vmatpush1.bf16.msra.mxu0 0
  %86 = vmatprep.subr.bf16.mxu0 0
  %87 = vmatpush1.bf16.msra.mxu0 0
  %88 = vmatprep.subr.bf16.mxu0 0
  %89 = vmatpush1.bf16.msra.mxu0 0
  %90 = vmatprep.subr.bf16.mxu0 0
  %91 = vmatpush1.bf16.msra.mxu0 0
  %92 = vmatprep.subr.bf16.mxu0 0
  %93 = vmatpush1.bf16.msra.mxu0 0
  %94 = vmatprep.subr.bf16.mxu0 0
  %95 = vmatpush1.bf16.msra.mxu0 0
  %96 = vmatprep.subr.bf16.mxu0 0
  %97 = vmatpush1.bf16.msra.mxu0 0
  %98 = vmatprep.subr.bf16.mxu0 0
  %99 = vmatpush1.bf16.msra.mxu0 0
  %100 = vmatprep.subr.bf16.mxu0 0
  %101 = vmatpush1.bf16.msra.mxu0 0
  %102 = vmatprep.subr.bf16.mxu0 0
  %103 = vmatpush1.bf16.msra.mxu0 0
  %104 = vmatprep.subr.bf16.mxu0 0
  %105 = vmatpush1.bf16.msra.mxu0 0
  %106 = vmatprep.subr.bf16.mxu0 0
  %107 = vmatpush1.bf16.msra.mxu0 0
  %108 = vmatprep.mubr.bf16.mxu0 0
  %109 = vmatmul.mubr.bf16.gmra.mrb[0].mxu0 %v74
  %v110 = vpop.f32.mrb[0].mxu0
  %v111 = vadd.f32 0.0, %v110
  %v112 = vpop.f32.mrb[0].mxu0
  %v113 = vpop.f32.mrb[0].mxu0
  %v114 = vadd.f32 0.0, %v113
  %v115 = vpop.f32.mrb[0].mxu0
  %116 = vdwg.mxu0
  %v117 = vadd.f32 %v31, %v111
  %v118 = vadd.f32 %v32, %v114
  %vm119 = vcmask 261120
  %120 = vst.msk [vmem:[#allocation2] sm:$0xff] %vm119, %v117
  %121 = vst.msk [vmem:[#allocation2 + $0x8] sm:$0xff] %vm119, %v118
  // Predicated region
  $region30: #{bert_forward.18} parent=0 // pred_check
    %p122 = pneg %p24
  $region31: #{bert_forward.18} parent=0 // pred_check_branch
    %124 = sbr.rel (%p122) target = $region33
  $region32: #{bert_forward.18} parent=0 // pred_region
    %v125 = vld [vmem:[#allocation2] sm:$0xff]
    %v126 = vld [vmem:[#allocation2 + $0x8] sm:$0xff]
    %v127 = vld [vmem:[%s2] sm:$0x1]
    %v129 = vlaneseq
    %v130 = vshrl.u32 %v129, 7
    %v131 = vsub.s32 0, %v130
    %v132 = vrot.slane %v127, %v131
    %v134 = vadd.f32 %v125, %v132
    %v135 = vadd.f32 %v126, %v132
    %v136 = vld [vmem:[%s3] sm:$0xf]
    %v137 = vld [vmem:[%s3 + $0x4] sm:$0xf]
    %v138 = vunpack.c.l.bf16 %v136
    %v139 = vunpack.c.l.bf16 %v137
    %v140 = vadd.f32 %v134, %v138
    %v141 = vadd.f32 %v135, %v139
    %v142 = vsel %vm119, %v140, 0.0
    %143 = vadd.xlane.f32.xlu0 %v142
    %v144 = vpop.xlane.xlu0 %143
    %v145 = vsel %vm119, %v141, 0.0
    %146 = vadd.xlane.f32.xlu0 %v145
    %v147 = vpop.xlane.xlu0 %146
    %v148 = vrcp.pop 32.0
    %v149 = vmul.f32 %v144, %v148
    %v150 = vmul.f32 %v147, %v148
    %v151 = vsub.f32 %v140, %v149
    %v152 = vsub.f32 %v141, %v150
    %v153 = vmul.f32 %v151, %v151
    %v154 = vmul.f32 %v152, %v152
    %v155 = vsel %vm119, %v153, 0.0
    %156 = vadd.xlane.f32.xlu0 %v155
    %v157 = vpop.xlane.xlu0 %156
    %v158 = vsel %vm119, %v154, 0.0
    %159 = vadd.xlane.f32.xlu0 %v158
    %v160 = vpop.xlane.xlu0 %159
    %v161 = vmul.f32 %v157, %v148
    %v162 = vmul.f32 %v160, %v148
    %v163 = vadd.f32 %v161, 1e-12
    %v164 = vadd.f32 %v162, 1e-12
    %v165 = vrsqrt.pop %v163
    %v166 = vrsqrt.pop %v164
    %v167 = vmul.f32 %v151, %v165
    %v168 = vmul.f32 %v152, %v166
    %v169 = vld [vmem:[%s4] sm:$0x1]
    %v171 = vlaneseq
    %v172 = vshrl.u32 %v171, 7
    %v173 = vsub.s32 0, %v172
    %v174 = vrot.slane %v169, %v173
    %v176 = vmul.f32 %v167, %v174
    %v177 = vmul.f32 %v168, %v174
    %v178 = vld [vmem:[%s5] sm:$0x1]
    %v180 = vlaneseq
    %v181 = vshrl.u32 %v180, 7
    %v182 = vsub.s32 0, %v181
    %v183 = vrot.slane %v178, %v182
    %v185 = vadd.f32 %v176, %v183
    %v186 = vadd.f32 %v177, %v183
    %v187 = vpack.c.bf16 %v186, %v185
    %v189 = vunpack.c.l.b16 %v187
    %v190 = vunpack.c.h.b16 %v187
    %v191 = vpack.c.b16 %v189, %v189
    %v192 = vpack.c.b16 %v190, %v190
    %vm195 = vcmask 257024
    %196 = vst.msk [vmem:[%s6] sm:$0xf] %vm195, %v191
    %197 = vst.msk [vmem:[%s6 + $0x4] sm:$0xf] %vm195, %v192
  $region33: #{bert_forward.18} parent=0 // pred_fallthru
    _
  // Predicated region
  $region34: #{bert_forward.18} parent=0 // pred_check
    _
  $region35: #{bert_forward.18} parent=0 // pred_check_branch
    %199 = sbr.rel (0) target = $region37
  $region36: #{bert_forward.18} parent=0 // pred_region
    _
  $region37: #{bert_forward.18} parent=0 // pred_fallthru
    _
  // Predicated region
  $region38: #{bert_forward.18} parent=0 // pred_check
    _
  $region39: #{bert_forward.18} parent=0 // pred_check_branch
    %201 = sbr.rel (0) target = $region41
  $region40: #{bert_forward.18} parent=0 // pred_region
    _
  $region41: #{bert_forward.18} parent=0 // pred_fallthru
    _

// kernel: bert_forward.25
$region0: #{bert_forward.25}
  #allocation0 [shape = 'u32[]', space=smem, size = 0x4, offset = 0x4, fixed_abs, tag = 'smem constant byte address 0x4 - core index']
  #allocation1 [shape = 'u32[144,128]{1,0:T(1,128)}', space=vmem, size = 0x12000, scoped, tag = 'internal scratch']
  #allocation2 [shape = 'f32[2,5]{1,0:T(2,128)}', space=vmem, size = 0x400, scoped, tag = 'scratch operand']
  %s0 = inlined_call_operand.vmem [shape: bf16[2,32], index: 0, kind: input, shape index: {}]
  %s1 = inlined_call_operand.vmem [shape: bf16[32,5], index: 1, kind: input, shape index: {}]
  %s2 = inlined_call_operand.vmem [shape: f32[1,5], index: 2, kind: input, shape index: {}]
  %s3 = inlined_call_operand.hbm [shape: f32[2,5], index: 3, kind: output, shape index: {}]
  %s4 = sld [smem:[#allocation0]]
  $region30: #{bert_forward.25} parent=0
    _
  %s6 = ssub.s32 1, %s4
  %s7 = scalar_select 0, %s6, %s4
  $region1: #{bert_forward.25} parent=0
    #allocation3 [shape = 'u8[1024]{0}', space=vmem, size = 0x400, scoped, tag = 'output window, operand 0, single buffered']
    #allocation4 [shape = 's32[1]{0}', space=sflag, size = 0x4, scoped, tag = 'scoped memory for bert_forward.25']
    %8 = vsyncpa [#allocation4], 0
    // Predicated region
    $region2: #{bert_forward.25} parent=1 // pred_check
      _
    $region3: #{bert_forward.25} parent=1 // pred_check_branch
      %10 = sbr.rel (0) target = $region5
    $region4: #{bert_forward.25} parent=1 // pred_region
      _
    $region5: #{bert_forward.25} parent=1 // pred_fallthru
      _
    // Predicated region
    $region6: #{bert_forward.25} parent=1 // pred_check
      _
    $region7: #{bert_forward.25} parent=1 // pred_check_branch
      %12 = sbr.rel (0) target = $region9
    $region8: #{bert_forward.25} parent=1 // pred_region
      _
    $region9: #{bert_forward.25} parent=1 // pred_fallthru
      _
    // Predicated region
    $region10: #{bert_forward.25} parent=1 // pred_check
      _
    $region11: #{bert_forward.25} parent=1 // pred_check_branch
      %14 = sbr.rel (0) target = $region13
    $region12: #{bert_forward.25} parent=1 // pred_region
      _
    $region13: #{bert_forward.25} parent=1 // pred_fallthru
      _
    %p16 = scmp.eq.s32.totalorder 0, 0
    // Predicated region
    $region14: #{bert_forward.25} parent=1 // pred_check
      %p17 = pneg %p16
    $region15: #{bert_forward.25} parent=1 // pred_check_branch
      %19 = sbr.rel (%p17) target = $region17
    $region16: #{bert_forward.25} parent=1 // pred_region
      %vm20 = vcmask 33792
      %21 = vst.msk [vmem:[#allocation2] sm:$0x3] %vm20, 0.0
    $region17: #{bert_forward.25} parent=1 // pred_fallthru
      _
    %v22 = vld [vmem:[#allocation2] sm:$0x3]
    %v23 = vld [vmem:[%s0] sm:$0x1]
    %v24 = vld [vmem:[%s1] sm:$0xf]
    %v25 = vld [vmem:[%s1 + $0x4] sm:$0xf]
    %v26 = vld [vmem:[%s1 + $0x8] sm:$0xf]
    %v27 = vld [vmem:[%s1 + $0xc] sm:$0xf]
    %v32 = vunpack.c.l.b16 %v24
    %v33 = vunpack.c.l.b16 %v25
    %v34 = vunpack.c.l.b16 %v26
    %v35 = vunpack.c.l.b16 %v27
    %v36 = vpack.c.b16 %v33, %v32
    %v37 = vpack.c.b16 %v35, %v34
    %vm40 = vcmask 261120
    %v42 = vsel %vm40, %v23, 0
    %44 = vmatprep.subr.bf16.mxu0 0
    %45 = vmatpush1.bf16.msra.mxu0 %v36
    %46 = vmatprep.subr.bf16.mxu0 0
    %47 = vmatpush1.bf16.msra.mxu0 %v37
    %48 = vmatprep.subr.bf16.mxu0 0
    %49 = vmatpush1.bf16.msra.mxu0 0
    %50 = vmatprep.subr.bf16.mxu0 0
    %51 = vmatpush1.bf16.msra.mxu0 0
    %52 = vmatprep.subr.bf16.mxu0 0
    %53 = vmatpush1.bf16.msra.mxu0 0
    %54 = vmatprep.subr.bf16.mxu0 0
    %55 = vmatpush1.bf16.msra.mxu0 0
    %56 = vmatprep.subr.bf16.mxu0 0
    %57 = vmatpush1.bf16.msra.mxu0 0
    %58 = vmatprep.subr.bf16.mxu0 0
    %59 = vmatpush1.bf16.msra.mxu0 0
    %60 = vmatprep.subr.bf16.mxu0 0
    %61 = vmatpush1.bf16.msra.mxu0 0
    %62 = vmatprep.subr.bf16.mxu0 0
    %63 = vmatpush1.bf16.msra.mxu0 0
    %64 = vmatprep.subr.bf16.mxu0 0
    %65 = vmatpush1.bf16.msra.mxu0 0
    %66 = vmatprep.subr.bf16.mxu0 0
    %67 = vmatpush1.bf16.msra.mxu0 0
    %68 = vmatprep.subr.bf16.mxu0 0
    %69 = vmatpush1.bf16.msra.mxu0 0
    %70 = vmatprep.subr.bf16.mxu0 0
    %71 = vmatpush1.bf16.msra.mxu0 0
    %72 = vmatprep.subr.bf16.mxu0 0
    %73 = vmatpush1.bf16.msra.mxu0 0
    %74 = vmatprep.subr.bf16.mxu0 0
    %75 = vmatpush1.bf16.msra.mxu0 0
    %76 = vmatprep.mubr.bf16.mxu0 0
    %77 = vmatmul.mubr.bf16.gmra.mrb[0].mxu0 %v42
    %v78 = vpop.f32.mrb[0].mxu0
    %v79 = vadd.f32 0.0, %v78
    %v80 = vpop.f32.mrb[0].mxu0
    %v81 = vpop.f32.mrb[0].mxu0
    %v82 = vpop.f32.mrb[0].mxu0
    %83 = vdwg.mxu0
    %v84 = vadd.f32 %v22, %v79
    %vm85 = vcmask 33792
    %86 = vst.msk [vmem:[#allocation2] sm:$0x3] %vm85, %v84
    // Predicated region
    $region18: #{bert_forward.25} parent=1 // pred_check
      %p87 = pneg %p16
    $region19: #{bert_forward.25} parent=1 // pred_check_branch
      %89 = sbr.rel (%p87) target = $region21
    $region20: #{bert_forward.25} parent=1 // pred_region
      %v90 = vld [vmem:[#allocation2] sm:$0x3]
      %v91 = vld [vmem:[%s2] sm:$0x1]
      %v93 = vlaneseq
      %v94 = vshrl.u32 %v93, 7
      %v95 = vsub.s32 0, %v94
      %v96 = vrot.slane %v91, %v95
      %v98 = vadd.f32 %v90, %v96
      %99 = vst.msk [vmem:[#allocation3] sm:$0x3] %vm85, %v98
    $region21: #{bert_forward.25} parent=1 // pred_fallthru
      _
    // Predicated region
    $region22: #{bert_forward.25} parent=1 // pred_check
      _
    $region23: #{bert_forward.25} parent=1 // pred_check_branch
      %101 = sbr.rel (0) target = $region25
    $region24: #{bert_forward.25} parent=1 // pred_region
      %s103 = ssub.s32 32, 32
      %104 = vsyncadd [#allocation4], %s103
      %s106 = sshll.u32 [#allocation3], 4
      %s107 = int_to_ptr.vmem [resolvable:$true] %s106
      %109 = dma.vmem_to_hbm [thread:$0]  %s107, 32, %s3, [#allocation4]
    $region25: #{bert_forward.25} parent=1 // pred_fallthru
      _
    // Predicated region
    $region26: #{bert_forward.25} parent=1 // pred_check
      _
    $region27: #{bert_forward.25} parent=1 // pred_check_branch
      %111 = sbr.rel (0) target = $region29
    $region28: #{bert_forward.25} parent=1 // pred_region
      %112 = dma.done [#allocation4], 32
    $region29: #{bert_forward.25} parent=1 // pred_fallthru
      _
    %113 = vsyncpa [#allocation4], 1

</llo_original>
